<compile_context>
chip_gen: v7x
topology: tpu7x:2x2x1
jax: 0.10.0
libtpu: 0.0.40
codegen_flags: <defaults>
</compile_context>

<pallas_src>
import functools
import math

import jax
import jax.numpy as jnp
from jax import lax
from jax.experimental import pallas as pl
from jax.experimental.pallas import tpu as pltpu


def _encoder_layer_kernel(
    x_q_ref, x_kv_ref,
    wq_ref, bq_ref, wkv_ref, bkv_ref, wo_ref, bo_ref,
    g1_ref, beta1_ref,
    w1_ref, b1_ref, w2_ref, b2_ref,
    g2_ref, beta2_ref,
    o_ref,
    attn_scr,
    *, num_heads: int, eps: float,
):
    f32, bf16 = jnp.float32, jnp.bfloat16

    x_q = x_q_ref[0].astype(f32)          # (TQ, D) query / residual rows
    x_kv = x_kv_ref[0]                    # (S, D)  full sequence (K/V source)
    TQ, D = x_q.shape
    S = x_kv.shape[0]
    Dh = D // num_heads
    scale = 1.0 / math.sqrt(Dh)

    # ---- projections: bf16 operands on the MXU, f32 accumulation ----
    q = jnp.dot(x_q.astype(bf16), wq_ref[...],
                preferred_element_type=f32) + bq_ref[...]            # (TQ, D)
    kv = jnp.dot(x_kv.astype(bf16), wkv_ref[...],
                 preferred_element_type=f32) + bkv_ref[...]          # (S, 2D)

    q_bf = q.astype(bf16)
    k_bf = kv[:, :D].astype(bf16)
    v_bf = kv[:, D:].astype(bf16)

    # ---- per-head scaled-dot-product attention (softmax stats in f32) ----
    for h in range(num_heads):
        sl = slice(h * Dh, (h + 1) * Dh)
        qh, kh, vh = q_bf[:, sl], k_bf[:, sl], v_bf[:, sl]           # (.,Dh) bf16
        s = lax.dot_general(qh, kh, (((1,), (1,)), ((), ())),
                            preferred_element_type=f32) * scale      # (TQ, S)
        m = jnp.max(s, axis=-1, keepdims=True)
        p = jnp.exp(s - m)
        l = jnp.sum(p, axis=-1, keepdims=True)
        p = p * pl.reciprocal(l, approx=True)                        # EUP, ~free
        oh = jnp.dot(p.astype(bf16), vh, preferred_element_type=f32)  # (TQ, Dh)
        attn_scr[:, sl] = oh.astype(bf16)

    # ---- single full-width output projection (one MXU stream, not H narrow ones) ----
    attn = jnp.dot(attn_scr[...], wo_ref[...],
                   preferred_element_type=f32) + bo_ref[...]

    # ---- residual + LayerNorm 1 (f32 statistics) ----
    h1 = x_q + attn
    mu1 = jnp.mean(h1, axis=-1, keepdims=True)
    var1 = jnp.mean((h1 - mu1) ** 2, axis=-1, keepdims=True)
    h1 = (h1 - mu1) * lax.rsqrt(var1 + eps) * g1_ref[...] + beta1_ref[...]

    # ---- FFN: Linear -> ReLU -> (dropout = id) -> Linear ----
    f = jnp.dot(h1.astype(bf16), w1_ref[...],
                preferred_element_type=f32) + b1_ref[...]
    f = jnp.maximum(f, 0.0)
    f = jnp.dot(f.astype(bf16), w2_ref[...],
                preferred_element_type=f32) + b2_ref[...]

    # ---- residual + LayerNorm 2 ----
    h2 = h1 + f
    mu2 = jnp.mean(h2, axis=-1, keepdims=True)
    var2 = jnp.mean((h2 - mu2) ** 2, axis=-1, keepdims=True)
    out = (h2 - mu2) * lax.rsqrt(var2 + eps) * g2_ref[...] + beta2_ref[...]

    o_ref[0] = out.astype(o_ref.dtype)


def encoder_layer(x: jax.Array, params: dict, *, num_heads: int,
                  eps: float = 1e-5) -> jax.Array:
    """x: (B, S, D) float32. Fused transformer-encoder-layer forward (eval mode)."""
    B, S, D = x.shape
    d_ff = params["w1"].shape[1]
    assert D % num_heads == 0

    # Query-row tile for the post-attention path (full seq at small S).
    tq = 256 if (S > 256 and S % 256 == 0) else S
    n_q = S // tq

    bf16, f32 = jnp.bfloat16, jnp.float32
    wq = params["wq"].astype(bf16)
    bq = params["bq"].astype(f32)
    wkv = jnp.concatenate([params["wk"], params["wv"]], axis=1).astype(bf16)
    bkv = jnp.concatenate([params["bk"], params["bv"]], axis=1).astype(f32)
    wo = params["wo"].astype(bf16)
    bo = params["bo"].astype(f32)
    w1 = params["w1"].astype(bf16)
    b1 = params["b1"].astype(f32)
    w2 = params["w2"].astype(bf16)
    b2 = params["b2"].astype(f32)
    g1, beta1 = params["g1"].astype(f32), params["beta1"].astype(f32)
    g2, beta2 = params["g2"].astype(f32), params["beta2"].astype(f32)

    kernel = functools.partial(_encoder_layer_kernel, num_heads=num_heads, eps=eps)

    def resident(shape):
        # Whole-array block, constant index_map, single-buffered: DMA'd once,
        # stays resident in VMEM without a wasted second pipeline buffer.
        nd = len(shape)
        return pl.BlockSpec(shape, lambda b, qi, _nd=nd: (0,) * _nd,
                            pipeline_mode=pl.Buffered(1))

    in_specs = [
        pl.BlockSpec((1, tq, D), lambda b, qi: (b, qi, 0)),   # x: query/residual tile
        pl.BlockSpec((1, S, D), lambda b, qi: (b, 0, 0)),     # x: full seq for K/V
        resident((D, D)), resident((1, D)),                   # wq, bq
        resident((D, 2 * D)), resident((1, 2 * D)),           # wkv, bkv
        resident((D, D)), resident((1, D)),                   # wo, bo
        resident((1, D)), resident((1, D)),                   # ln1 gamma, beta
        resident((D, d_ff)), resident((1, d_ff)),             # ffn w1, b1
        resident((d_ff, D)), resident((1, D)),                # ffn w2, b2
        resident((1, D)), resident((1, D)),                   # ln2 gamma, beta
    ]
    out_spec = pl.BlockSpec((1, tq, D), lambda b, qi: (b, qi, 0))

    # Explicit VMEM budget: bf16 weights (single-buffered) + tiles + live values.
    weight_bytes = 2 * (D * D + 2 * D * D + D * D + D * d_ff + d_ff * D) \
                   + 4 * (D + 2 * D + D + d_ff + 5 * D)
    act_bytes = 2 * 4 * (tq * D + S * D)            # double-buffered x blocks
    out_bytes = 2 * 4 * tq * D
    live_bytes = 4 * (2 * S * D + tq * d_ff + tq * S + 6 * tq * D) + 2 * tq * D
    vmem_limit = int(1.3 * (weight_bytes + act_bytes + out_bytes + live_bytes)) + (2 << 20)
    vmem_limit = max(8 << 20, min(vmem_limit, 100 << 20))

    flops_step = 2 * (tq * D * D + S * D * 2 * D + 2 * tq * S * D
                      + tq * D * D + 2 * tq * D * d_ff)
    cost = pl.CostEstimate(
        flops=int(B * n_q * flops_step),
        transcendentals=int(B * n_q * (num_heads * tq * S + num_heads * tq + 2 * tq)),
        bytes_accessed=int(4 * B * S * D * (2 + n_q) + weight_bytes),
    )

    return pl.pallas_call(
        kernel,
        out_shape=jax.ShapeDtypeStruct((B, S, D), x.dtype),
        grid_spec=pltpu.PrefetchScalarGridSpec(
            num_scalar_prefetch=0,
            grid=(B, n_q),
            in_specs=in_specs,
            out_specs=out_spec,
            scratch_shapes=[pltpu.VMEM((tq, D), jnp.bfloat16)],
        ),
        compiler_params=pltpu.CompilerParams(
            dimension_semantics=("parallel", "parallel"),
            vmem_limit_bytes=vmem_limit,
        ),
        cost_estimate=cost,
    )(
        x, x,
        wq, bq, wkv, bkv, wo, bo,
        g1, beta1,
        w1, b1, w2, b2,
        g2, beta2,
    )


def _reference(x: jax.Array, params: dict, *, num_heads: int,
               eps: float = 1e-5) -> jax.Array:
    """Pure-JAX f32 mirror of the PyTorch EncoderLayer forward (eval mode)."""
    B, S, D = x.shape
    head_dim = D // num_heads
    scale = 1.0 / math.sqrt(head_dim)

    q = x @ params["wq"] + params["bq"]
    k = x @ params["wk"] + params["bk"]
    v = x @ params["wv"] + params["bv"]

    def split(t):
        return t.reshape(B, S, num_heads, head_dim).transpose(0, 2, 1, 3)

    qh, kh, vh = split(q), split(k), split(v)
    s = jnp.einsum("bhqd,bhkd->bhqk", qh, kh) * scale
    p = jax.nn.softmax(s, axis=-1)
    o = jnp.einsum("bhqk,bhkd->bhqd", p, vh)
    o = o.transpose(0, 2, 1, 3).reshape(B, S, D)
    attn = o @ params["wo"] + params["bo"]

    def layer_norm(h, g, b):
        mu = jnp.mean(h, -1, keepdims=True)
        var = jnp.mean((h - mu) ** 2, -1, keepdims=True)
        return (h - mu) / jnp.sqrt(var + eps) * g + b

    h1 = layer_norm(x + attn, params["g1"], params["beta1"])
    f = jnp.maximum(h1 @ params["w1"] + params["b1"], 0.0)
    f = f @ params["w2"] + params["b2"]
    return layer_norm(h1 + f, params["g2"], params["beta2"])


if __name__ == "__main__":
    key = jax.random.PRNGKey(0)
    B, S, D, H, D_FF = 2, 8, 32, 4, 64   # batch, seq, d_model, num_heads, d_ff
    keys = jax.random.split(key, 17)

    def nrm(k, shape, scl=0.1):
        return scl * jax.random.normal(k, shape, dtype=jnp.float32)

    params = dict(
        wq=nrm(keys[0], (D, D)),   bq=nrm(keys[1], (1, D)),
        wk=nrm(keys[2], (D, D)),   bk=nrm(keys[3], (1, D)),
        wv=nrm(keys[4], (D, D)),   bv=nrm(keys[5], (1, D)),
        wo=nrm(keys[6], (D, D)),   bo=nrm(keys[7], (1, D)),
        g1=1.0 + nrm(keys[8], (1, D)),  beta1=nrm(keys[9], (1, D)),
        w1=nrm(keys[10], (D, D_FF)),    b1=nrm(keys[11], (1, D_FF)),
        w2=nrm(keys[12], (D_FF, D)),    b2=nrm(keys[13], (1, D)),
        g2=1.0 + nrm(keys[14], (1, D)), beta2=nrm(keys[15], (1, D)),
    )
    x = jax.random.normal(keys[16], (B, S, D), dtype=jnp.float32)

    out = encoder_layer(x, params, num_heads=H)
    out = jax.block_until_ready(out)

    ref = _reference(x, params, num_heads=H)
    assert out.shape == (B, S, D)
    err = float(jnp.max(jnp.abs(out - ref)))
    # bf16 MXU operands + approx reciprocal -> looser tolerance than a pure-f32 kernel.
    assert jnp.allclose(out, ref, atol=5e-2, rtol=5e-2), f"max abs err = {err}"

    print("KERNEL_OK")
</pallas_src>

<mosaic_0001>
module attributes {stable_mosaic.version = 11 : i64} {
  func.func @_encoder_layer_kernel(%arg0: i32, %arg1: i32, %arg2: memref<1x8x32xf32, #tpu.memory_space<vmem>>, %arg3: memref<1x8x32xf32, #tpu.memory_space<vmem>>, %arg4: memref<32x32xbf16, #tpu.memory_space<vmem>>, %arg5: memref<1x32xf32, #tpu.memory_space<vmem>>, %arg6: memref<32x64xbf16, #tpu.memory_space<vmem>>, %arg7: memref<1x64xf32, #tpu.memory_space<vmem>>, %arg8: memref<32x32xbf16, #tpu.memory_space<vmem>>, %arg9: memref<1x32xf32, #tpu.memory_space<vmem>>, %arg10: memref<1x32xf32, #tpu.memory_space<vmem>>, %arg11: memref<1x32xf32, #tpu.memory_space<vmem>>, %arg12: memref<32x64xbf16, #tpu.memory_space<vmem>>, %arg13: memref<1x64xf32, #tpu.memory_space<vmem>>, %arg14: memref<64x32xbf16, #tpu.memory_space<vmem>>, %arg15: memref<1x32xf32, #tpu.memory_space<vmem>>, %arg16: memref<1x32xf32, #tpu.memory_space<vmem>>, %arg17: memref<1x32xf32, #tpu.memory_space<vmem>>, %arg18: memref<1x8x32xf32, #tpu.memory_space<vmem>>, %arg19: memref<8x32xbf16, #tpu.memory_space<vmem>>) attributes {dimension_semantics = [#tpu.dimension_semantics<parallel>, #tpu.dimension_semantics<parallel>], iteration_bounds = array<i64: 2, 1>, scalar_prefetch = 0 : i64, scratch_operands = 1 : i64, tpu.core_type = #tpu.core_type<tc>, window_params = [{transform_indices = @transform_0, window_bounds = array<i64: 1, 8, 32>}, {transform_indices = @transform_1, window_bounds = array<i64: 1, 8, 32>}, {pipeline_mode = #tpu.pipeline_mode<synchronous>, transform_indices = @transform_2, window_bounds = array<i64: 32, 32>}, {pipeline_mode = #tpu.pipeline_mode<synchronous>, transform_indices = @transform_3, window_bounds = array<i64: 1, 32>}, {pipeline_mode = #tpu.pipeline_mode<synchronous>, transform_indices = @transform_4, window_bounds = array<i64: 32, 64>}, {pipeline_mode = #tpu.pipeline_mode<synchronous>, transform_indices = @transform_5, window_bounds = array<i64: 1, 64>}, {pipeline_mode = #tpu.pipeline_mode<synchronous>, transform_indices = @transform_6, window_bounds = array<i64: 32, 32>}, {pipeline_mode = #tpu.pipeline_mode<synchronous>, transform_indices = @transform_7, window_bounds = array<i64: 1, 32>}, {pipeline_mode = #tpu.pipeline_mode<synchronous>, transform_indices = @transform_8, window_bounds = array<i64: 1, 32>}, {pipeline_mode = #tpu.pipeline_mode<synchronous>, transform_indices = @transform_9, window_bounds = array<i64: 1, 32>}, {pipeline_mode = #tpu.pipeline_mode<synchronous>, transform_indices = @transform_10, window_bounds = array<i64: 32, 64>}, {pipeline_mode = #tpu.pipeline_mode<synchronous>, transform_indices = @transform_11, window_bounds = array<i64: 1, 64>}, {pipeline_mode = #tpu.pipeline_mode<synchronous>, transform_indices = @transform_12, window_bounds = array<i64: 64, 32>}, {pipeline_mode = #tpu.pipeline_mode<synchronous>, transform_indices = @transform_13, window_bounds = array<i64: 1, 32>}, {pipeline_mode = #tpu.pipeline_mode<synchronous>, transform_indices = @transform_14, window_bounds = array<i64: 1, 32>}, {pipeline_mode = #tpu.pipeline_mode<synchronous>, transform_indices = @transform_15, window_bounds = array<i64: 1, 32>}, {transform_indices = @transform_16, window_bounds = array<i64: 1, 8, 32>}]} {
    %c0 = arith.constant 0 : index
    %c0_0 = arith.constant 0 : index
    %c0_1 = arith.constant 0 : index
    %0 = vector.load %arg2[%c0, %c0_0, %c0_1] : memref<1x8x32xf32, #tpu.memory_space<vmem>>, vector<1x8x32xf32>
    %1 = vector.shape_cast %0 : vector<1x8x32xf32> to vector<8x32xf32>
    %c0_2 = arith.constant 0 : index
    %c0_3 = arith.constant 0 : index
    %c0_4 = arith.constant 0 : index
    %2 = vector.load %arg3[%c0_2, %c0_3, %c0_4] : memref<1x8x32xf32, #tpu.memory_space<vmem>>, vector<1x8x32xf32>
    %3 = vector.shape_cast %2 : vector<1x8x32xf32> to vector<8x32xf32>
    %4 = arith.truncf %1 : vector<8x32xf32> to vector<8x32xbf16>
    %c0_5 = arith.constant 0 : index
    %c0_6 = arith.constant 0 : index
    %5 = vector.load %arg4[%c0_5, %c0_6] : memref<32x32xbf16, #tpu.memory_space<vmem>>, vector<32x32xbf16>
    %cst = arith.constant dense<0.000000e+00> : vector<8x32xf32>
    %6 = tpu.matmul %4, %5, %cst {dimension_numbers = #tpu.dot_dimension_numbers<[1], [0], [0], [1], [0, 0, 1, 1], [], []>} : vector<8x32xbf16>, vector<32x32xbf16>, vector<8x32xf32> -> vector<8x32xf32>
    %c0_7 = arith.constant 0 : index
    %c0_8 = arith.constant 0 : index
    %7 = vector.load %arg5[%c0_7, %c0_8] : memref<1x32xf32, #tpu.memory_space<vmem>>, vector<1x32xf32>
    %8 = vector.broadcast %7 : vector<1x32xf32> to vector<8x32xf32>
    %9 = arith.addf %6, %8 : vector<8x32xf32>
    %10 = arith.truncf %3 : vector<8x32xf32> to vector<8x32xbf16>
    %c0_9 = arith.constant 0 : index
    %c0_10 = arith.constant 0 : index
    %11 = vector.load %arg6[%c0_9, %c0_10] : memref<32x64xbf16, #tpu.memory_space<vmem>>, vector<32x64xbf16>
    %cst_11 = arith.constant dense<0.000000e+00> : vector<8x64xf32>
    %12 = tpu.matmul %10, %11, %cst_11 {dimension_numbers = #tpu.dot_dimension_numbers<[1], [0], [0], [1], [0, 0, 1, 1], [], []>} : vector<8x32xbf16>, vector<32x64xbf16>, vector<8x64xf32> -> vector<8x64xf32>
    %c0_12 = arith.constant 0 : index
    %c0_13 = arith.constant 0 : index
    %13 = vector.load %arg7[%c0_12, %c0_13] : memref<1x64xf32, #tpu.memory_space<vmem>>, vector<1x64xf32>
    %14 = vector.broadcast %13 : vector<1x64xf32> to vector<8x64xf32>
    %15 = arith.addf %12, %14 : vector<8x64xf32>
    %16 = arith.truncf %9 : vector<8x32xf32> to vector<8x32xbf16>
    %17 = vector.extract_strided_slice %15 {offsets = [0, 0], sizes = [8, 32], strides = [1, 1]} : vector<8x64xf32> to vector<8x32xf32>
    %18 = arith.truncf %17 : vector<8x32xf32> to vector<8x32xbf16>
    %19 = vector.extract_strided_slice %15 {offsets = [0, 32], sizes = [8, 32], strides = [1, 1]} : vector<8x64xf32> to vector<8x32xf32>
    %20 = arith.truncf %19 : vector<8x32xf32> to vector<8x32xbf16>
    %21 = vector.extract_strided_slice %16 {offsets = [0, 0], sizes = [8, 8], strides = [1, 1]} : vector<8x32xbf16> to vector<8x8xbf16>
    %22 = vector.extract_strided_slice %18 {offsets = [0, 0], sizes = [8, 8], strides = [1, 1]} : vector<8x32xbf16> to vector<8x8xbf16>
    %23 = vector.extract_strided_slice %20 {offsets = [0, 0], sizes = [8, 8], strides = [1, 1]} : vector<8x32xbf16> to vector<8x8xbf16>
    %cst_14 = arith.constant dense<0.000000e+00> : vector<8x8xf32>
    %24 = tpu.matmul %21, %22, %cst_14 {dimension_numbers = #tpu.dot_dimension_numbers<[1], [1], [0], [0], [0, 0, 1, 0], [], []>} : vector<8x8xbf16>, vector<8x8xbf16>, vector<8x8xf32> -> vector<8x8xf32>
    %cst_15 = arith.constant 0.353553385 : f32
    %25 = vector.broadcast %cst_15 : f32 to vector<8x8xf32>
    %26 = arith.mulf %24, %25 : vector<8x8xf32>
    %cst_16 = arith.constant dense<0xFF800000> : vector<8xf32>
    %27 = vector.multi_reduction <maximumf>, %26, %cst_16 [1] : vector<8x8xf32> to vector<8xf32>
    %28 = vector.shape_cast %27 : vector<8xf32> to vector<8x1xf32>
    %29 = vector.broadcast %28 : vector<8x1xf32> to vector<8x8xf32>
    %30 = arith.subf %26, %29 : vector<8x8xf32>
    %31 = math.exp %30 : vector<8x8xf32>
    %cst_17 = arith.constant dense<0.000000e+00> : vector<8xf32>
    %32 = vector.multi_reduction <add>, %31, %cst_17 [1] : vector<8x8xf32> to vector<8xf32>
    %33 = vector.shape_cast %32 : vector<8xf32> to vector<8x1xf32>
    %34 = tpu.reciprocal %33 {approx = true} : vector<8x1xf32> -> vector<8x1xf32>
    %35 = vector.broadcast %34 : vector<8x1xf32> to vector<8x8xf32>
    %36 = arith.mulf %31, %35 : vector<8x8xf32>
    %37 = arith.truncf %36 : vector<8x8xf32> to vector<8x8xbf16>
    %cst_18 = arith.constant dense<0.000000e+00> : vector<8x8xf32>
    %38 = tpu.matmul %37, %23, %cst_18 {dimension_numbers = #tpu.dot_dimension_numbers<[1], [0], [0], [1], [0, 0, 1, 1], [], []>} : vector<8x8xbf16>, vector<8x8xbf16>, vector<8x8xf32> -> vector<8x8xf32>
    %39 = arith.truncf %38 : vector<8x8xf32> to vector<8x8xbf16>
    %c0_19 = arith.constant 0 : index
    %c0_20 = arith.constant 0 : index
    %40 = vector.load %arg19[%c0_19, %c0_20] : memref<8x32xbf16, #tpu.memory_space<vmem>>, vector<8x8xbf16>
    tpu.vector_store %arg19[%c0_19, %c0_20], %39 {strides = array<i32>} : memref<8x32xbf16, #tpu.memory_space<vmem>>, vector<8x8xbf16>,
    %41 = vector.extract_strided_slice %16 {offsets = [0, 8], sizes = [8, 8], strides = [1, 1]} : vector<8x32xbf16> to vector<8x8xbf16>
    %42 = vector.extract_strided_slice %18 {offsets = [0, 8], sizes = [8, 8], strides = [1, 1]} : vector<8x32xbf16> to vector<8x8xbf16>
    %43 = vector.extract_strided_slice %20 {offsets = [0, 8], sizes = [8, 8], strides = [1, 1]} : vector<8x32xbf16> to vector<8x8xbf16>
    %cst_21 = arith.constant dense<0.000000e+00> : vector<8x8xf32>
    %44 = tpu.matmul %41, %42, %cst_21 {dimension_numbers = #tpu.dot_dimension_numbers<[1], [1], [0], [0], [0, 0, 1, 0], [], []>} : vector<8x8xbf16>, vector<8x8xbf16>, vector<8x8xf32> -> vector<8x8xf32>
    %cst_22 = arith.constant 0.353553385 : f32
    %45 = vector.broadcast %cst_22 : f32 to vector<8x8xf32>
    %46 = arith.mulf %44, %45 : vector<8x8xf32>
    %cst_23 = arith.constant dense<0xFF800000> : vector<8xf32>
    %47 = vector.multi_reduction <maximumf>, %46, %cst_23 [1] : vector<8x8xf32> to vector<8xf32>
    %48 = vector.shape_cast %47 : vector<8xf32> to vector<8x1xf32>
    %49 = vector.broadcast %48 : vector<8x1xf32> to vector<8x8xf32>
    %50 = arith.subf %46, %49 : vector<8x8xf32>
    %51 = math.exp %50 : vector<8x8xf32>
    %cst_24 = arith.constant dense<0.000000e+00> : vector<8xf32>
    %52 = vector.multi_reduction <add>, %51, %cst_24 [1] : vector<8x8xf32> to vector<8xf32>
    %53 = vector.shape_cast %52 : vector<8xf32> to vector<8x1xf32>
    %54 = tpu.reciprocal %53 {approx = true} : vector<8x1xf32> -> vector<8x1xf32>
    %55 = vector.broadcast %54 : vector<8x1xf32> to vector<8x8xf32>
    %56 = arith.mulf %51, %55 : vector<8x8xf32>
    %57 = arith.truncf %56 : vector<8x8xf32> to vector<8x8xbf16>
    %cst_25 = arith.constant dense<0.000000e+00> : vector<8x8xf32>
    %58 = tpu.matmul %57, %43, %cst_25 {dimension_numbers = #tpu.dot_dimension_numbers<[1], [0], [0], [1], [0, 0, 1, 1], [], []>} : vector<8x8xbf16>, vector<8x8xbf16>, vector<8x8xf32> -> vector<8x8xf32>
    %59 = arith.truncf %58 : vector<8x8xf32> to vector<8x8xbf16>
    %c0_26 = arith.constant 0 : index
    %c8 = arith.constant 8 : index
    %60 = vector.load %arg19[%c0_26, %c8] : memref<8x32xbf16, #tpu.memory_space<vmem>>, vector<8x8xbf16>
    tpu.vector_store %arg19[%c0_26, %c8], %59 {strides = array<i32>} : memref<8x32xbf16, #tpu.memory_space<vmem>>, vector<8x8xbf16>,
    %61 = vector.extract_strided_slice %16 {offsets = [0, 16], sizes = [8, 8], strides = [1, 1]} : vector<8x32xbf16> to vector<8x8xbf16>
    %62 = vector.extract_strided_slice %18 {offsets = [0, 16], sizes = [8, 8], strides = [1, 1]} : vector<8x32xbf16> to vector<8x8xbf16>
    %63 = vector.extract_strided_slice %20 {offsets = [0, 16], sizes = [8, 8], strides = [1, 1]} : vector<8x32xbf16> to vector<8x8xbf16>
    %cst_27 = arith.constant dense<0.000000e+00> : vector<8x8xf32>
    %64 = tpu.matmul %61, %62, %cst_27 {dimension_numbers = #tpu.dot_dimension_numbers<[1], [1], [0], [0], [0, 0, 1, 0], [], []>} : vector<8x8xbf16>, vector<8x8xbf16>, vector<8x8xf32> -> vector<8x8xf32>
    %cst_28 = arith.constant 0.353553385 : f32
    %65 = vector.broadcast %cst_28 : f32 to vector<8x8xf32>
    %66 = arith.mulf %64, %65 : vector<8x8xf32>
    %cst_29 = arith.constant dense<0xFF800000> : vector<8xf32>
    %67 = vector.multi_reduction <maximumf>, %66, %cst_29 [1] : vector<8x8xf32> to vector<8xf32>
    %68 = vector.shape_cast %67 : vector<8xf32> to vector<8x1xf32>
    %69 = vector.broadcast %68 : vector<8x1xf32> to vector<8x8xf32>
    %70 = arith.subf %66, %69 : vector<8x8xf32>
    %71 = math.exp %70 : vector<8x8xf32>
    %cst_30 = arith.constant dense<0.000000e+00> : vector<8xf32>
    %72 = vector.multi_reduction <add>, %71, %cst_30 [1] : vector<8x8xf32> to vector<8xf32>
    %73 = vector.shape_cast %72 : vector<8xf32> to vector<8x1xf32>
    %74 = tpu.reciprocal %73 {approx = true} : vector<8x1xf32> -> vector<8x1xf32>
    %75 = vector.broadcast %74 : vector<8x1xf32> to vector<8x8xf32>
    %76 = arith.mulf %71, %75 : vector<8x8xf32>
    %77 = arith.truncf %76 : vector<8x8xf32> to vector<8x8xbf16>
    %cst_31 = arith.constant dense<0.000000e+00> : vector<8x8xf32>
    %78 = tpu.matmul %77, %63, %cst_31 {dimension_numbers = #tpu.dot_dimension_numbers<[1], [0], [0], [1], [0, 0, 1, 1], [], []>} : vector<8x8xbf16>, vector<8x8xbf16>, vector<8x8xf32> -> vector<8x8xf32>
    %79 = arith.truncf %78 : vector<8x8xf32> to vector<8x8xbf16>
    %c0_32 = arith.constant 0 : index
    %c16 = arith.constant 16 : index
    %80 = vector.load %arg19[%c0_32, %c16] : memref<8x32xbf16, #tpu.memory_space<vmem>>, vector<8x8xbf16>
    tpu.vector_store %arg19[%c0_32, %c16], %79 {strides = array<i32>} : memref<8x32xbf16, #tpu.memory_space<vmem>>, vector<8x8xbf16>,
    %81 = vector.extract_strided_slice %16 {offsets = [0, 24], sizes = [8, 8], strides = [1, 1]} : vector<8x32xbf16> to vector<8x8xbf16>
    %82 = vector.extract_strided_slice %18 {offsets = [0, 24], sizes = [8, 8], strides = [1, 1]} : vector<8x32xbf16> to vector<8x8xbf16>
    %83 = vector.extract_strided_slice %20 {offsets = [0, 24], sizes = [8, 8], strides = [1, 1]} : vector<8x32xbf16> to vector<8x8xbf16>
    %cst_33 = arith.constant dense<0.000000e+00> : vector<8x8xf32>
    %84 = tpu.matmul %81, %82, %cst_33 {dimension_numbers = #tpu.dot_dimension_numbers<[1], [1], [0], [0], [0, 0, 1, 0], [], []>} : vector<8x8xbf16>, vector<8x8xbf16>, vector<8x8xf32> -> vector<8x8xf32>
    %cst_34 = arith.constant 0.353553385 : f32
    %85 = vector.broadcast %cst_34 : f32 to vector<8x8xf32>
    %86 = arith.mulf %84, %85 : vector<8x8xf32>
    %cst_35 = arith.constant dense<0xFF800000> : vector<8xf32>
    %87 = vector.multi_reduction <maximumf>, %86, %cst_35 [1] : vector<8x8xf32> to vector<8xf32>
    %88 = vector.shape_cast %87 : vector<8xf32> to vector<8x1xf32>
    %89 = vector.broadcast %88 : vector<8x1xf32> to vector<8x8xf32>
    %90 = arith.subf %86, %89 : vector<8x8xf32>
    %91 = math.exp %90 : vector<8x8xf32>
    %cst_36 = arith.constant dense<0.000000e+00> : vector<8xf32>
    %92 = vector.multi_reduction <add>, %91, %cst_36 [1] : vector<8x8xf32> to vector<8xf32>
    %93 = vector.shape_cast %92 : vector<8xf32> to vector<8x1xf32>
    %94 = tpu.reciprocal %93 {approx = true} : vector<8x1xf32> -> vector<8x1xf32>
    %95 = vector.broadcast %94 : vector<8x1xf32> to vector<8x8xf32>
    %96 = arith.mulf %91, %95 : vector<8x8xf32>
    %97 = arith.truncf %96 : vector<8x8xf32> to vector<8x8xbf16>
    %cst_37 = arith.constant dense<0.000000e+00> : vector<8x8xf32>
    %98 = tpu.matmul %97, %83, %cst_37 {dimension_numbers = #tpu.dot_dimension_numbers<[1], [0], [0], [1], [0, 0, 1, 1], [], []>} : vector<8x8xbf16>, vector<8x8xbf16>, vector<8x8xf32> -> vector<8x8xf32>
    %99 = arith.truncf %98 : vector<8x8xf32> to vector<8x8xbf16>
    %c0_38 = arith.constant 0 : index
    %c24 = arith.constant 24 : index
    %100 = vector.load %arg19[%c0_38, %c24] : memref<8x32xbf16, #tpu.memory_space<vmem>>, vector<8x8xbf16>
    tpu.vector_store %arg19[%c0_38, %c24], %99 {strides = array<i32>} : memref<8x32xbf16, #tpu.memory_space<vmem>>, vector<8x8xbf16>,
    %c0_39 = arith.constant 0 : index
    %c0_40 = arith.constant 0 : index
    %101 = vector.load %arg19[%c0_39, %c0_40] : memref<8x32xbf16, #tpu.memory_space<vmem>>, vector<8x32xbf16>
    %c0_41 = arith.constant 0 : index
    %c0_42 = arith.constant 0 : index
    %102 = vector.load %arg8[%c0_41, %c0_42] : memref<32x32xbf16, #tpu.memory_space<vmem>>, vector<32x32xbf16>
    %cst_43 = arith.constant dense<0.000000e+00> : vector<8x32xf32>
    %103 = tpu.matmul %101, %102, %cst_43 {dimension_numbers = #tpu.dot_dimension_numbers<[1], [0], [0], [1], [0, 0, 1, 1], [], []>} : vector<8x32xbf16>, vector<32x32xbf16>, vector<8x32xf32> -> vector<8x32xf32>
    %c0_44 = arith.constant 0 : index
    %c0_45 = arith.constant 0 : index
    %104 = vector.load %arg9[%c0_44, %c0_45] : memref<1x32xf32, #tpu.memory_space<vmem>>, vector<1x32xf32>
    %105 = vector.broadcast %104 : vector<1x32xf32> to vector<8x32xf32>
    %106 = arith.addf %103, %105 : vector<8x32xf32>
    %107 = arith.addf %1, %106 : vector<8x32xf32>
    %cst_46 = arith.constant dense<0.000000e+00> : vector<8xf32>
    %108 = vector.multi_reduction <add>, %107, %cst_46 [1] : vector<8x32xf32> to vector<8xf32>
    %109 = vector.shape_cast %108 : vector<8xf32> to vector<8x1xf32>
    %cst_47 = arith.constant 3.200000e+01 : f32
    %110 = vector.broadcast %cst_47 : f32 to vector<8x1xf32>
    %111 = arith.divf %109, %110 : vector<8x1xf32>
    %112 = vector.broadcast %111 : vector<8x1xf32> to vector<8x32xf32>
    %113 = arith.subf %107, %112 : vector<8x32xf32>
    %114 = arith.mulf %113, %113 : vector<8x32xf32>
    %cst_48 = arith.constant dense<0.000000e+00> : vector<8xf32>
    %115 = vector.multi_reduction <add>, %114, %cst_48 [1] : vector<8x32xf32> to vector<8xf32>
    %116 = vector.shape_cast %115 : vector<8xf32> to vector<8x1xf32>
    %cst_49 = arith.constant 3.200000e+01 : f32
    %117 = vector.broadcast %cst_49 : f32 to vector<8x1xf32>
    %118 = arith.divf %116, %117 : vector<8x1xf32>
    %119 = vector.broadcast %111 : vector<8x1xf32> to vector<8x32xf32>
    %120 = arith.subf %107, %119 : vector<8x32xf32>
    %cst_50 = arith.constant 9.99999974E-6 : f32
    %121 = vector.broadcast %cst_50 : f32 to vector<8x1xf32>
    %122 = arith.addf %118, %121 : vector<8x1xf32>
    %123 = math.rsqrt %122 : vector<8x1xf32>
    %124 = vector.broadcast %123 : vector<8x1xf32> to vector<8x32xf32>
    %125 = arith.mulf %120, %124 : vector<8x32xf32>
    %c0_51 = arith.constant 0 : index
    %c0_52 = arith.constant 0 : index
    %126 = vector.load %arg10[%c0_51, %c0_52] : memref<1x32xf32, #tpu.memory_space<vmem>>, vector<1x32xf32>
    %127 = vector.broadcast %126 : vector<1x32xf32> to vector<8x32xf32>
    %128 = arith.mulf %125, %127 : vector<8x32xf32>
    %c0_53 = arith.constant 0 : index
    %c0_54 = arith.constant 0 : index
    %129 = vector.load %arg11[%c0_53, %c0_54] : memref<1x32xf32, #tpu.memory_space<vmem>>, vector<1x32xf32>
    %130 = vector.broadcast %129 : vector<1x32xf32> to vector<8x32xf32>
    %131 = arith.addf %128, %130 : vector<8x32xf32>
    %132 = arith.truncf %131 : vector<8x32xf32> to vector<8x32xbf16>
    %c0_55 = arith.constant 0 : index
    %c0_56 = arith.constant 0 : index
    %133 = vector.load %arg12[%c0_55, %c0_56] : memref<32x64xbf16, #tpu.memory_space<vmem>>, vector<32x64xbf16>
    %cst_57 = arith.constant dense<0.000000e+00> : vector<8x64xf32>
    %134 = tpu.matmul %132, %133, %cst_57 {dimension_numbers = #tpu.dot_dimension_numbers<[1], [0], [0], [1], [0, 0, 1, 1], [], []>} : vector<8x32xbf16>, vector<32x64xbf16>, vector<8x64xf32> -> vector<8x64xf32>
    %c0_58 = arith.constant 0 : index
    %c0_59 = arith.constant 0 : index
    %135 = vector.load %arg13[%c0_58, %c0_59] : memref<1x64xf32, #tpu.memory_space<vmem>>, vector<1x64xf32>
    %136 = vector.broadcast %135 : vector<1x64xf32> to vector<8x64xf32>
    %137 = arith.addf %134, %136 : vector<8x64xf32>
    %cst_60 = arith.constant 0.000000e+00 : f32
    %138 = vector.broadcast %cst_60 : f32 to vector<8x64xf32>
    %139 = arith.maximumf %137, %138 : vector<8x64xf32>
    %140 = arith.truncf %139 : vector<8x64xf32> to vector<8x64xbf16>
    %c0_61 = arith.constant 0 : index
    %c0_62 = arith.constant 0 : index
    %141 = vector.load %arg14[%c0_61, %c0_62] : memref<64x32xbf16, #tpu.memory_space<vmem>>, vector<64x32xbf16>
    %cst_63 = arith.constant dense<0.000000e+00> : vector<8x32xf32>
    %142 = tpu.matmul %140, %141, %cst_63 {dimension_numbers = #tpu.dot_dimension_numbers<[1], [0], [0], [1], [0, 0, 1, 1], [], []>} : vector<8x64xbf16>, vector<64x32xbf16>, vector<8x32xf32> -> vector<8x32xf32>
    %c0_64 = arith.constant 0 : index
    %c0_65 = arith.constant 0 : index
    %143 = vector.load %arg15[%c0_64, %c0_65] : memref<1x32xf32, #tpu.memory_space<vmem>>, vector<1x32xf32>
    %144 = vector.broadcast %143 : vector<1x32xf32> to vector<8x32xf32>
    %145 = arith.addf %142, %144 : vector<8x32xf32>
    %146 = arith.addf %131, %145 : vector<8x32xf32>
    %cst_66 = arith.constant dense<0.000000e+00> : vector<8xf32>
    %147 = vector.multi_reduction <add>, %146, %cst_66 [1] : vector<8x32xf32> to vector<8xf32>
    %148 = vector.shape_cast %147 : vector<8xf32> to vector<8x1xf32>
    %cst_67 = arith.constant 3.200000e+01 : f32
    %149 = vector.broadcast %cst_67 : f32 to vector<8x1xf32>
    %150 = arith.divf %148, %149 : vector<8x1xf32>
    %151 = vector.broadcast %150 : vector<8x1xf32> to vector<8x32xf32>
    %152 = arith.subf %146, %151 : vector<8x32xf32>
    %153 = arith.mulf %152, %152 : vector<8x32xf32>
    %cst_68 = arith.constant dense<0.000000e+00> : vector<8xf32>
    %154 = vector.multi_reduction <add>, %153, %cst_68 [1] : vector<8x32xf32> to vector<8xf32>
    %155 = vector.shape_cast %154 : vector<8xf32> to vector<8x1xf32>
    %cst_69 = arith.constant 3.200000e+01 : f32
    %156 = vector.broadcast %cst_69 : f32 to vector<8x1xf32>
    %157 = arith.divf %155, %156 : vector<8x1xf32>
    %158 = vector.broadcast %150 : vector<8x1xf32> to vector<8x32xf32>
    %159 = arith.subf %146, %158 : vector<8x32xf32>
    %cst_70 = arith.constant 9.99999974E-6 : f32
    %160 = vector.broadcast %cst_70 : f32 to vector<8x1xf32>
    %161 = arith.addf %157, %160 : vector<8x1xf32>
    %162 = math.rsqrt %161 : vector<8x1xf32>
    %163 = vector.broadcast %162 : vector<8x1xf32> to vector<8x32xf32>
    %164 = arith.mulf %159, %163 : vector<8x32xf32>
    %c0_71 = arith.constant 0 : index
    %c0_72 = arith.constant 0 : index
    %165 = vector.load %arg16[%c0_71, %c0_72] : memref<1x32xf32, #tpu.memory_space<vmem>>, vector<1x32xf32>
    %166 = vector.broadcast %165 : vector<1x32xf32> to vector<8x32xf32>
    %167 = arith.mulf %164, %166 : vector<8x32xf32>
    %c0_73 = arith.constant 0 : index
    %c0_74 = arith.constant 0 : index
    %168 = vector.load %arg17[%c0_73, %c0_74] : memref<1x32xf32, #tpu.memory_space<vmem>>, vector<1x32xf32>
    %169 = vector.broadcast %168 : vector<1x32xf32> to vector<8x32xf32>
    %170 = arith.addf %167, %169 : vector<8x32xf32>
    %c0_75 = arith.constant 0 : index
    %c0_76 = arith.constant 0 : index
    %c0_77 = arith.constant 0 : index
    %171 = vector.load %arg18[%c0_75, %c0_76, %c0_77] : memref<1x8x32xf32, #tpu.memory_space<vmem>>, vector<1x8x32xf32>
    %172 = vector.shape_cast %171 : vector<1x8x32xf32> to vector<8x32xf32>
    %173 = vector.shape_cast %170 : vector<8x32xf32> to vector<1x8x32xf32>
    tpu.vector_store %arg18[%c0_75, %c0_76, %c0_77], %173 {strides = array<i32>} : memref<1x8x32xf32, #tpu.memory_space<vmem>>, vector<1x8x32xf32>,
    return
  }
  func.func @transform_0(%arg0: i32, %arg1: i32) -> (i32, i32, i32) {
    %c0_i32 = arith.constant 0 : i32
    %c0_i32_0 = arith.constant 0 : i32
    return %arg0, %arg1, %c0_i32 : i32, i32, i32
  }
  func.func @transform_1(%arg0: i32, %arg1: i32) -> (i32, i32, i32) {
    %c0_i32 = arith.constant 0 : i32
    %c0_i32_0 = arith.constant 0 : i32
    %c0_i32_1 = arith.constant 0 : i32
    return %arg0, %c0_i32, %c0_i32_0 : i32, i32, i32
  }
  func.func @transform_2(%arg0: i32, %arg1: i32) -> (i32, i32) {
    %c0_i32 = arith.constant 0 : i32
    %c0_i32_0 = arith.constant 0 : i32
    %c0_i32_1 = arith.constant 0 : i32
    return %c0_i32, %c0_i32_0 : i32, i32
  }
  func.func @transform_3(%arg0: i32, %arg1: i32) -> (i32, i32) {
    %c0_i32 = arith.constant 0 : i32
    %c0_i32_0 = arith.constant 0 : i32
    %c0_i32_1 = arith.constant 0 : i32
    return %c0_i32, %c0_i32_0 : i32, i32
  }
  func.func @transform_4(%arg0: i32, %arg1: i32) -> (i32, i32) {
    %c0_i32 = arith.constant 0 : i32
    %c0_i32_0 = arith.constant 0 : i32
    %c0_i32_1 = arith.constant 0 : i32
    return %c0_i32, %c0_i32_0 : i32, i32
  }
  func.func @transform_5(%arg0: i32, %arg1: i32) -> (i32, i32) {
    %c0_i32 = arith.constant 0 : i32
    %c0_i32_0 = arith.constant 0 : i32
    %c0_i32_1 = arith.constant 0 : i32
    return %c0_i32, %c0_i32_0 : i32, i32
  }
  func.func @transform_6(%arg0: i32, %arg1: i32) -> (i32, i32) {
    %c0_i32 = arith.constant 0 : i32
    %c0_i32_0 = arith.constant 0 : i32
    %c0_i32_1 = arith.constant 0 : i32
    return %c0_i32, %c0_i32_0 : i32, i32
  }
  func.func @transform_7(%arg0: i32, %arg1: i32) -> (i32, i32) {
    %c0_i32 = arith.constant 0 : i32
    %c0_i32_0 = arith.constant 0 : i32
    %c0_i32_1 = arith.constant 0 : i32
    return %c0_i32, %c0_i32_0 : i32, i32
  }
  func.func @transform_8(%arg0: i32, %arg1: i32) -> (i32, i32) {
    %c0_i32 = arith.constant 0 : i32
    %c0_i32_0 = arith.constant 0 : i32
    %c0_i32_1 = arith.constant 0 : i32
    return %c0_i32, %c0_i32_0 : i32, i32
  }
  func.func @transform_9(%arg0: i32, %arg1: i32) -> (i32, i32) {
    %c0_i32 = arith.constant 0 : i32
    %c0_i32_0 = arith.constant 0 : i32
    %c0_i32_1 = arith.constant 0 : i32
    return %c0_i32, %c0_i32_0 : i32, i32
  }
  func.func @transform_10(%arg0: i32, %arg1: i32) -> (i32, i32) {
    %c0_i32 = arith.constant 0 : i32
    %c0_i32_0 = arith.constant 0 : i32
    %c0_i32_1 = arith.constant 0 : i32
    return %c0_i32, %c0_i32_0 : i32, i32
  }
  func.func @transform_11(%arg0: i32, %arg1: i32) -> (i32, i32) {
    %c0_i32 = arith.constant 0 : i32
    %c0_i32_0 = arith.constant 0 : i32
    %c0_i32_1 = arith.constant 0 : i32
    return %c0_i32, %c0_i32_0 : i32, i32
  }
  func.func @transform_12(%arg0: i32, %arg1: i32) -> (i32, i32) {
    %c0_i32 = arith.constant 0 : i32
    %c0_i32_0 = arith.constant 0 : i32
    %c0_i32_1 = arith.constant 0 : i32
    return %c0_i32, %c0_i32_0 : i32, i32
  }
  func.func @transform_13(%arg0: i32, %arg1: i32) -> (i32, i32) {
    %c0_i32 = arith.constant 0 : i32
    %c0_i32_0 = arith.constant 0 : i32
    %c0_i32_1 = arith.constant 0 : i32
    return %c0_i32, %c0_i32_0 : i32, i32
  }
  func.func @transform_14(%arg0: i32, %arg1: i32) -> (i32, i32) {
    %c0_i32 = arith.constant 0 : i32
    %c0_i32_0 = arith.constant 0 : i32
    %c0_i32_1 = arith.constant 0 : i32
    return %c0_i32, %c0_i32_0 : i32, i32
  }
  func.func @transform_15(%arg0: i32, %arg1: i32) -> (i32, i32) {
    %c0_i32 = arith.constant 0 : i32
    %c0_i32_0 = arith.constant 0 : i32
    %c0_i32_1 = arith.constant 0 : i32
    return %c0_i32, %c0_i32_0 : i32, i32
  }
  func.func @transform_16(%arg0: i32, %arg1: i32) -> (i32, i32, i32) {
    %c0_i32 = arith.constant 0 : i32
    %c0_i32_0 = arith.constant 0 : i32
    return %arg0, %arg1, %c0_i32 : i32, i32, i32
  }
}

</mosaic_0001>

<llo_original>
// kernel: tpu_custom_call.1
$region0: #{tpu_custom_call.1}
  #allocation0 [shape = 'u32[]', space=smem, size = 0x4, offset = 0x4, fixed_abs, tag = 'smem constant byte address 0x4 - core index']
  #allocation1 [shape = 'u32[144,128]{1,0:T(1,128)}', space=vmem, size = 0x12000, scoped, tag = 'internal scratch']
  #allocation2 [shape = 'bf16[8,32]{1,0:T(8,128)(2,1)}', space=vmem, size = 0x800, scoped, tag = 'scratch operand']
  %s0 = inlined_call_operand.vmem [shape: f32[2,8,32], index: 0, kind: input, shape index: {}]
  %s1 = inlined_call_operand.vmem [shape: f32[2,8,32], index: 1, kind: input, shape index: {}]
  %s2 = inlined_call_operand.vmem [shape: bf16[32,32], index: 2, kind: input, shape index: {}]
  %s3 = inlined_call_operand.vmem [shape: f32[1,32], index: 3, kind: input, shape index: {}]
  %s4 = inlined_call_operand.hbm [shape: bf16[32,64], index: 4, kind: input, shape index: {}]
  %s5 = inlined_call_operand.vmem [shape: f32[1,64], index: 5, kind: input, shape index: {}]
  %s6 = inlined_call_operand.hbm [shape: bf16[32,32], index: 6, kind: input, shape index: {}]
  %s7 = inlined_call_operand.hbm [shape: f32[1,32], index: 7, kind: input, shape index: {}]
  %s8 = inlined_call_operand.hbm [shape: f32[1,32], index: 8, kind: input, shape index: {}]
  %s9 = inlined_call_operand.hbm [shape: f32[1,32], index: 9, kind: input, shape index: {}]
  %s10 = inlined_call_operand.vmem [shape: bf16[32,64], index: 10, kind: input, shape index: {}]
  %s11 = inlined_call_operand.vmem [shape: f32[1,64], index: 11, kind: input, shape index: {}]
  %s12 = inlined_call_operand.vmem [shape: bf16[64,32], index: 12, kind: input, shape index: {}]
  %s13 = inlined_call_operand.vmem [shape: f32[1,32], index: 13, kind: input, shape index: {}]
  %s14 = inlined_call_operand.vmem [shape: f32[1,32], index: 14, kind: input, shape index: {}]
  %s15 = inlined_call_operand.vmem [shape: f32[1,32], index: 15, kind: input, shape index: {}]
  %s16 = inlined_call_operand.hbm [shape: f32[2,8,32], index: 16, kind: output, shape index: {}]
  %s17 = sld [smem:[#allocation0]]
  $region117: #{tpu_custom_call.1} parent=0
    _
  %s19 = ssub.s32 1, %s17
  %s20 = scalar_select 0, %s19, %s17
  $region1: #{tpu_custom_call.1} parent=0
    #allocation3 [shape = 'u8[8192]{0}', space=vmem, size = 0x2000, scoped, tag = 'input window, operand 4, single buffered']
    #allocation4 [shape = 's32[2]{0}', space=sflag, size = 0x8, scoped, tag = 'scoped memory for tpu_custom_call.1']
    #allocation5 [shape = 's32[2]{0}', space=sflag, size = 0x8, scoped, tag = 'scoped memory for tpu_custom_call.1']
    #allocation6 [shape = 'u8[8192]{0}', space=vmem, size = 0x2000, scoped, tag = 'input window, operand 6, single buffered']
    #allocation7 [shape = 's32[1]{0}', space=sflag, size = 0x4, scoped, tag = 'scoped memory for tpu_custom_call.1']
    #allocation8 [shape = 'u8[512]{0}', space=vmem, size = 0x400, scoped, tag = 'input window, operand 7, single buffered']
    #allocation9 [shape = 'u8[512]{0}', space=vmem, size = 0x400, scoped, tag = 'input window, operand 8, single buffered']
    #allocation10 [shape = 's32[1]{0}', space=sflag, size = 0x4, scoped, tag = 'scoped memory for tpu_custom_call.1']
    #allocation11 [shape = 'u8[512]{0}', space=vmem, size = 0x400, scoped, tag = 'input window, operand 9, single buffered']
    #allocation12 [shape = 'u8[8192]{0}', space=vmem, size = 0x2000, scoped, tag = 'output window, operand 0']
    %21 = vsyncpa [#allocation4], 0
    %22 = vsyncpa [#allocation7], 0
    %23 = vsyncpa [#allocation10], 0
    %24 = vsyncpa [#allocation5], 0
    %s25 = scalar_lea.sflag [#allocation5], 1
    %26 = vsyncpa %s25, 0
    loop: start=0, step=1, limit=4
    $region2: #{tpu_custom_call.1} parent=1 // loop_pre_header
      _
    $region3: #{tpu_custom_call.1} parent=1 // loop_header
      %s28 = sphi 0, %s32
      %p29 = scmp.ge.s32.totalorder %s28, 4
      %s35 = sphi 0, %s47
      %s36 = sphi 0, %s43
      %s37 = sphi 0, %s35
      %s38 = sphi 0, %s36
      %s39 = sphi 0, %s37
      %s40 = sphi 0, %s38
      %s52 = sphi 0, %s54
      %s55 = sphi 0, %s52
      %s56 = sphi 0, %s55
      %s72 = sphi 0, %s56
      %s78 = sphi 0, %s80
      %s81 = sphi 0, %s78
      %s82 = sphi 0, %s81
      %s98 = sphi 0, %s82
      %s102 = sphi 0, %s102
      %s104 = sphi 0, %s102
      %s105 = sphi 0, %s104
      %s119 = sphi 0, %s105
      %s123 = sphi 0, %s123
      %s125 = sphi 0, %s123
      %s126 = sphi 0, %s125
      %s140 = sphi 0, %s126
      %s144 = sphi 0, %s144
      %s146 = sphi 0, %s144
      %s147 = sphi 0, %s146
      %s161 = sphi 0, %s147
      %s165 = sphi 0, %s165
      %s167 = sphi 0, %s165
      %s168 = sphi 0, %s167
      %s182 = sphi 0, %s168
      %s186 = sphi 0, %s186
      %s188 = sphi 0, %s186
      %s189 = sphi 0, %s188
      %s203 = sphi 0, %s189
      %s207 = sphi 0, %s207
      %s209 = sphi 0, %s207
      %s210 = sphi 0, %s209
      %s224 = sphi 0, %s210
      %s228 = sphi 0, %s228
      %s230 = sphi 0, %s228
      %s231 = sphi 0, %s230
      %s245 = sphi 0, %s231
      %s249 = sphi 0, %s249
      %s251 = sphi 0, %s249
      %s252 = sphi 0, %s251
      %s266 = sphi 0, %s252
      %s270 = sphi 0, %s270
      %s272 = sphi 0, %s270
      %s273 = sphi 0, %s272
      %s287 = sphi 0, %s273
      %s291 = sphi 0, %s291
      %s293 = sphi 0, %s291
      %s294 = sphi 0, %s293
      %s308 = sphi 0, %s294
      %s312 = sphi 0, %s312
      %s314 = sphi 0, %s312
      %s315 = sphi 0, %s314
      %s329 = sphi 0, %s315
      %s333 = sphi 0, %s333
      %s335 = sphi 0, %s333
      %s336 = sphi 0, %s335
      %s350 = sphi 0, %s336
      %s354 = sphi 0, %s354
      %s356 = sphi 0, %s354
      %s357 = sphi 0, %s356
      %s371 = sphi 0, %s357
      %s375 = sphi 0, %s375
      %s377 = sphi 0, %s375
      %s378 = sphi 0, %s377
      %s392 = sphi 0, %s378
      %s400 = sphi 0, %s402
      %s403 = sphi 0, %s400
      %s404 = sphi 0, %s403
      %s420 = sphi 0, %s404
    $region4: #{tpu_custom_call.1} parent=1 // loop_header_branch
      %31 = sbr.rel (%p29) target = $region8
    $region5: #{tpu_custom_call.1} parent=1 // loop_body
      %s33 = ssub.s32 %s28, 1
      %s34 = ssub.s32 %s28, 2
      %s41 = sadd.s32 1, %s36
      %p42 = scmp.ge.s32.totalorder %s41, 1
      %s43 = scalar_select %p42, 0, %s41
      %s44 = sadd.s32 1, %s35
      %s45 = scalar_select %p42, %s44, %s35
      %p46 = scmp.ge.s32.totalorder %s45, 2
      %s47 = scalar_select %p46, 0, %s45
      %s48 = ssub.s32 %s35, %s47
      %s49 = ssub.s32 %s36, %s43
      %s50 = sor.u32 %s48, %s49
      %p51 = scmp.eq.s32.totalorder %s50, 0
      %s53 = sadd.s32 %s52, 1
      %s54 = scalar_select %p51, %s52, %s53
      %p57 = pneg %p51
      %p58 = scmp.eq.s32.totalorder %s28, 1
      %p59 = por %p57, %p58
      %p60 = scmp.ne.s32.totalorder %s52, %s55
      %p61 = scmp.eq.s32.totalorder %s28, 0
      %p62 = por %p60, %p61
      %p63 = scmp.ne.s32.totalorder %s52, %s55
      %p64 = scmp.eq.s32.totalorder %s33, 1
      %p65 = por %p63, %p64
      %p66 = scmp.ne.s32.totalorder %s55, %s56
      %p67 = scmp.eq.s32.totalorder %s33, 0
      %p68 = por %p66, %p67
      %p69 = scmp.ne.s32.totalorder %s55, %s56
      %p70 = scmp.eq.s32.totalorder %s34, 1
      %p71 = por %p69, %p70
      %p73 = scmp.ne.s32.totalorder %s56, %s72
      %p74 = scmp.eq.s32.totalorder %s34, 0
      %p75 = por %p73, %p74
      %s76 = ssub.s32 %s35, %s47
      %p77 = scmp.eq.s32.totalorder %s76, 0
      %s79 = sadd.s32 %s78, 1
      %s80 = scalar_select %p77, %s78, %s79
      %p83 = pneg %p77
      %p84 = scmp.eq.s32.totalorder %s28, 1
      %p85 = por %p83, %p84
      %p86 = scmp.ne.s32.totalorder %s78, %s81
      %p87 = scmp.eq.s32.totalorder %s28, 0
      %p88 = por %p86, %p87
      %p89 = scmp.ne.s32.totalorder %s78, %s81
      %p90 = scmp.eq.s32.totalorder %s33, 1
      %p91 = por %p89, %p90
      %p92 = scmp.ne.s32.totalorder %s81, %s82
      %p93 = scmp.eq.s32.totalorder %s33, 0
      %p94 = por %p92, %p93
      %p95 = scmp.ne.s32.totalorder %s81, %s82
      %p96 = scmp.eq.s32.totalorder %s34, 1
      %p97 = por %p95, %p96
      %p99 = scmp.ne.s32.totalorder %s82, %s98
      %p100 = scmp.eq.s32.totalorder %s34, 0
      %p101 = por %p99, %p100
      %s103 = sadd.s32 %s102, 1
      %p106 = scmp.eq.s32.totalorder %s28, 1
      %p107 = scmp.ne.s32.totalorder %s102, %s104
      %p108 = scmp.eq.s32.totalorder %s28, 0
      %p109 = por %p107, %p108
      %p110 = scmp.ne.s32.totalorder %s102, %s104
      %p111 = scmp.eq.s32.totalorder %s33, 1
      %p112 = por %p110, %p111
      %p113 = scmp.ne.s32.totalorder %s104, %s105
      %p114 = scmp.eq.s32.totalorder %s33, 0
      %p115 = por %p113, %p114
      %p116 = scmp.ne.s32.totalorder %s104, %s105
      %p117 = scmp.eq.s32.totalorder %s34, 1
      %p118 = por %p116, %p117
      %p120 = scmp.ne.s32.totalorder %s105, %s119
      %p121 = scmp.eq.s32.totalorder %s34, 0
      %p122 = por %p120, %p121
      %s124 = sadd.s32 %s123, 1
      %p127 = scmp.eq.s32.totalorder %s28, 1
      %p128 = scmp.ne.s32.totalorder %s123, %s125
      %p129 = scmp.eq.s32.totalorder %s28, 0
      %p130 = por %p128, %p129
      %p131 = scmp.ne.s32.totalorder %s123, %s125
      %p132 = scmp.eq.s32.totalorder %s33, 1
      %p133 = por %p131, %p132
      %p134 = scmp.ne.s32.totalorder %s125, %s126
      %p135 = scmp.eq.s32.totalorder %s33, 0
      %p136 = por %p134, %p135
      %p137 = scmp.ne.s32.totalorder %s125, %s126
      %p138 = scmp.eq.s32.totalorder %s34, 1
      %p139 = por %p137, %p138
      %p141 = scmp.ne.s32.totalorder %s126, %s140
      %p142 = scmp.eq.s32.totalorder %s34, 0
      %p143 = por %p141, %p142
      %s145 = sadd.s32 %s144, 1
      %p148 = scmp.eq.s32.totalorder %s28, 1
      %p149 = scmp.ne.s32.totalorder %s144, %s146
      %p150 = scmp.eq.s32.totalorder %s28, 0
      %p151 = por %p149, %p150
      %p152 = scmp.ne.s32.totalorder %s144, %s146
      %p153 = scmp.eq.s32.totalorder %s33, 1
      %p154 = por %p152, %p153
      %p155 = scmp.ne.s32.totalorder %s146, %s147
      %p156 = scmp.eq.s32.totalorder %s33, 0
      %p157 = por %p155, %p156
      %p158 = scmp.ne.s32.totalorder %s146, %s147
      %p159 = scmp.eq.s32.totalorder %s34, 1
      %p160 = por %p158, %p159
      %p162 = scmp.ne.s32.totalorder %s147, %s161
      %p163 = scmp.eq.s32.totalorder %s34, 0
      %p164 = por %p162, %p163
      %s166 = sadd.s32 %s165, 1
      %p169 = scmp.eq.s32.totalorder %s28, 1
      %p170 = scmp.ne.s32.totalorder %s165, %s167
      %p171 = scmp.eq.s32.totalorder %s28, 0
      %p172 = por %p170, %p171
      %p173 = scmp.ne.s32.totalorder %s165, %s167
      %p174 = scmp.eq.s32.totalorder %s33, 1
      %p175 = por %p173, %p174
      %p176 = scmp.ne.s32.totalorder %s167, %s168
      %p177 = scmp.eq.s32.totalorder %s33, 0
      %p178 = por %p176, %p177
      %p179 = scmp.ne.s32.totalorder %s167, %s168
      %p180 = scmp.eq.s32.totalorder %s34, 1
      %p181 = por %p179, %p180
      %p183 = scmp.ne.s32.totalorder %s168, %s182
      %p184 = scmp.eq.s32.totalorder %s34, 0
      %p185 = por %p183, %p184
      %s187 = sadd.s32 %s186, 1
      %p190 = scmp.eq.s32.totalorder %s28, 1
      %p191 = scmp.ne.s32.totalorder %s186, %s188
      %p192 = scmp.eq.s32.totalorder %s28, 0
      %p193 = por %p191, %p192
      %p194 = scmp.ne.s32.totalorder %s186, %s188
      %p195 = scmp.eq.s32.totalorder %s33, 1
      %p196 = por %p194, %p195
      %p197 = scmp.ne.s32.totalorder %s188, %s189
      %p198 = scmp.eq.s32.totalorder %s33, 0
      %p199 = por %p197, %p198
      %p200 = scmp.ne.s32.totalorder %s188, %s189
      %p201 = scmp.eq.s32.totalorder %s34, 1
      %p202 = por %p200, %p201
      %p204 = scmp.ne.s32.totalorder %s189, %s203
      %p205 = scmp.eq.s32.totalorder %s34, 0
      %p206 = por %p204, %p205
      %s208 = sadd.s32 %s207, 1
      %p211 = scmp.eq.s32.totalorder %s28, 1
      %p212 = scmp.ne.s32.totalorder %s207, %s209
      %p213 = scmp.eq.s32.totalorder %s28, 0
      %p214 = por %p212, %p213
      %p215 = scmp.ne.s32.totalorder %s207, %s209
      %p216 = scmp.eq.s32.totalorder %s33, 1
      %p217 = por %p215, %p216
      %p218 = scmp.ne.s32.totalorder %s209, %s210
      %p219 = scmp.eq.s32.totalorder %s33, 0
      %p220 = por %p218, %p219
      %p221 = scmp.ne.s32.totalorder %s209, %s210
      %p222 = scmp.eq.s32.totalorder %s34, 1
      %p223 = por %p221, %p222
      %p225 = scmp.ne.s32.totalorder %s210, %s224
      %p226 = scmp.eq.s32.totalorder %s34, 0
      %p227 = por %p225, %p226
      %s229 = sadd.s32 %s228, 1
      %p232 = scmp.eq.s32.totalorder %s28, 1
      %p233 = scmp.ne.s32.totalorder %s228, %s230
      %p234 = scmp.eq.s32.totalorder %s28, 0
      %p235 = por %p233, %p234
      %p236 = scmp.ne.s32.totalorder %s228, %s230
      %p237 = scmp.eq.s32.totalorder %s33, 1
      %p238 = por %p236, %p237
      %p239 = scmp.ne.s32.totalorder %s230, %s231
      %p240 = scmp.eq.s32.totalorder %s33, 0
      %p241 = por %p239, %p240
      %p242 = scmp.ne.s32.totalorder %s230, %s231
      %p243 = scmp.eq.s32.totalorder %s34, 1
      %p244 = por %p242, %p243
      %p246 = scmp.ne.s32.totalorder %s231, %s245
      %p247 = scmp.eq.s32.totalorder %s34, 0
      %p248 = por %p246, %p247
      %s250 = sadd.s32 %s249, 1
      %p253 = scmp.eq.s32.totalorder %s28, 1
      %p254 = scmp.ne.s32.totalorder %s249, %s251
      %p255 = scmp.eq.s32.totalorder %s28, 0
      %p256 = por %p254, %p255
      %p257 = scmp.ne.s32.totalorder %s249, %s251
      %p258 = scmp.eq.s32.totalorder %s33, 1
      %p259 = por %p257, %p258
      %p260 = scmp.ne.s32.totalorder %s251, %s252
      %p261 = scmp.eq.s32.totalorder %s33, 0
      %p262 = por %p260, %p261
      %p263 = scmp.ne.s32.totalorder %s251, %s252
      %p264 = scmp.eq.s32.totalorder %s34, 1
      %p265 = por %p263, %p264
      %p267 = scmp.ne.s32.totalorder %s252, %s266
      %p268 = scmp.eq.s32.totalorder %s34, 0
      %p269 = por %p267, %p268
      %s271 = sadd.s32 %s270, 1
      %p274 = scmp.eq.s32.totalorder %s28, 1
      %p275 = scmp.ne.s32.totalorder %s270, %s272
      %p276 = scmp.eq.s32.totalorder %s28, 0
      %p277 = por %p275, %p276
      %p278 = scmp.ne.s32.totalorder %s270, %s272
      %p279 = scmp.eq.s32.totalorder %s33, 1
      %p280 = por %p278, %p279
      %p281 = scmp.ne.s32.totalorder %s272, %s273
      %p282 = scmp.eq.s32.totalorder %s33, 0
      %p283 = por %p281, %p282
      %p284 = scmp.ne.s32.totalorder %s272, %s273
      %p285 = scmp.eq.s32.totalorder %s34, 1
      %p286 = por %p284, %p285
      %p288 = scmp.ne.s32.totalorder %s273, %s287
      %p289 = scmp.eq.s32.totalorder %s34, 0
      %p290 = por %p288, %p289
      %s292 = sadd.s32 %s291, 1
      %p295 = scmp.eq.s32.totalorder %s28, 1
      %p296 = scmp.ne.s32.totalorder %s291, %s293
      %p297 = scmp.eq.s32.totalorder %s28, 0
      %p298 = por %p296, %p297
      %p299 = scmp.ne.s32.totalorder %s291, %s293
      %p300 = scmp.eq.s32.totalorder %s33, 1
      %p301 = por %p299, %p300
      %p302 = scmp.ne.s32.totalorder %s293, %s294
      %p303 = scmp.eq.s32.totalorder %s33, 0
      %p304 = por %p302, %p303
      %p305 = scmp.ne.s32.totalorder %s293, %s294
      %p306 = scmp.eq.s32.totalorder %s34, 1
      %p307 = por %p305, %p306
      %p309 = scmp.ne.s32.totalorder %s294, %s308
      %p310 = scmp.eq.s32.totalorder %s34, 0
      %p311 = por %p309, %p310
      %s313 = sadd.s32 %s312, 1
      %p316 = scmp.eq.s32.totalorder %s28, 1
      %p317 = scmp.ne.s32.totalorder %s312, %s314
      %p318 = scmp.eq.s32.totalorder %s28, 0
      %p319 = por %p317, %p318
      %p320 = scmp.ne.s32.totalorder %s312, %s314
      %p321 = scmp.eq.s32.totalorder %s33, 1
      %p322 = por %p320, %p321
      %p323 = scmp.ne.s32.totalorder %s314, %s315
      %p324 = scmp.eq.s32.totalorder %s33, 0
      %p325 = por %p323, %p324
      %p326 = scmp.ne.s32.totalorder %s314, %s315
      %p327 = scmp.eq.s32.totalorder %s34, 1
      %p328 = por %p326, %p327
      %p330 = scmp.ne.s32.totalorder %s315, %s329
      %p331 = scmp.eq.s32.totalorder %s34, 0
      %p332 = por %p330, %p331
      %s334 = sadd.s32 %s333, 1
      %p337 = scmp.eq.s32.totalorder %s28, 1
      %p338 = scmp.ne.s32.totalorder %s333, %s335
      %p339 = scmp.eq.s32.totalorder %s28, 0
      %p340 = por %p338, %p339
      %p341 = scmp.ne.s32.totalorder %s333, %s335
      %p342 = scmp.eq.s32.totalorder %s33, 1
      %p343 = por %p341, %p342
      %p344 = scmp.ne.s32.totalorder %s335, %s336
      %p345 = scmp.eq.s32.totalorder %s33, 0
      %p346 = por %p344, %p345
      %p347 = scmp.ne.s32.totalorder %s335, %s336
      %p348 = scmp.eq.s32.totalorder %s34, 1
      %p349 = por %p347, %p348
      %p351 = scmp.ne.s32.totalorder %s336, %s350
      %p352 = scmp.eq.s32.totalorder %s34, 0
      %p353 = por %p351, %p352
      %s355 = sadd.s32 %s354, 1
      %p358 = scmp.eq.s32.totalorder %s28, 1
      %p359 = scmp.ne.s32.totalorder %s354, %s356
      %p360 = scmp.eq.s32.totalorder %s28, 0
      %p361 = por %p359, %p360
      %p362 = scmp.ne.s32.totalorder %s354, %s356
      %p363 = scmp.eq.s32.totalorder %s33, 1
      %p364 = por %p362, %p363
      %p365 = scmp.ne.s32.totalorder %s356, %s357
      %p366 = scmp.eq.s32.totalorder %s33, 0
      %p367 = por %p365, %p366
      %p368 = scmp.ne.s32.totalorder %s356, %s357
      %p369 = scmp.eq.s32.totalorder %s34, 1
      %p370 = por %p368, %p369
      %p372 = scmp.ne.s32.totalorder %s357, %s371
      %p373 = scmp.eq.s32.totalorder %s34, 0
      %p374 = por %p372, %p373
      %s376 = sadd.s32 %s375, 1
      %p379 = scmp.eq.s32.totalorder %s28, 1
      %p380 = scmp.ne.s32.totalorder %s375, %s377
      %p381 = scmp.eq.s32.totalorder %s28, 0
      %p382 = por %p380, %p381
      %p383 = scmp.ne.s32.totalorder %s375, %s377
      %p384 = scmp.eq.s32.totalorder %s33, 1
      %p385 = por %p383, %p384
      %p386 = scmp.ne.s32.totalorder %s377, %s378
      %p387 = scmp.eq.s32.totalorder %s33, 0
      %p388 = por %p386, %p387
      %p389 = scmp.ne.s32.totalorder %s377, %s378
      %p390 = scmp.eq.s32.totalorder %s34, 1
      %p391 = por %p389, %p390
      %p393 = scmp.ne.s32.totalorder %s378, %s392
      %p394 = scmp.eq.s32.totalorder %s34, 0
      %p395 = por %p393, %p394
      %s396 = ssub.s32 %s35, %s47
      %s397 = ssub.s32 %s36, %s43
      %s398 = sor.u32 %s396, %s397
      %p399 = scmp.eq.s32.totalorder %s398, 0
      %s401 = sadd.s32 %s400, 1
      %s402 = scalar_select %p399, %s400, %s401
      %p405 = pneg %p399
      %p406 = scmp.eq.s32.totalorder %s28, 1
      %p407 = por %p405, %p406
      %p408 = scmp.ne.s32.totalorder %s400, %s403
      %p409 = scmp.eq.s32.totalorder %s28, 0
      %p410 = por %p408, %p409
      %p411 = scmp.ne.s32.totalorder %s400, %s403
      %p412 = scmp.eq.s32.totalorder %s33, 1
      %p413 = por %p411, %p412
      %p414 = scmp.ne.s32.totalorder %s403, %s404
      %p415 = scmp.eq.s32.totalorder %s33, 0
      %p416 = por %p414, %p415
      %p417 = scmp.ne.s32.totalorder %s403, %s404
      %p418 = scmp.eq.s32.totalorder %s34, 1
      %p419 = por %p417, %p418
      %p421 = scmp.ne.s32.totalorder %s404, %s420
      %p422 = scmp.eq.s32.totalorder %s34, 0
      %p423 = por %p421, %p422
      %p424 = scmp.le.s32.totalorder 1, %s28
      %p425 = scmp.lt.s32.totalorder %s28, 3
      %p426 = pnand %p424, %p425
      %p427 = pneg %p426
      // Predicated region
      $region9: #{tpu_custom_call.1} parent=5 // pred_check
        _
      $region10: #{tpu_custom_call.1} parent=5 // pred_check_branch
        %429 = sbr.rel (%p426) target = $region12
      $region11: #{tpu_custom_call.1} parent=5 // pred_region
        %s430 = ssub.s32 %s28, 1
        // Predicated region
        $region13: #{tpu_custom_call.1} parent=11 // pred_check
          %p431 = pneg %p115
        $region14: #{tpu_custom_call.1} parent=11 // pred_check_branch
          %433 = sbr.rel (%p431) target = $region16
        $region15: #{tpu_custom_call.1} parent=11 // pred_region
          _
        $region16: #{tpu_custom_call.1} parent=11 // pred_fallthru
          _
        // Predicated region
        $region17: #{tpu_custom_call.1} parent=11 // pred_check
          %p434 = pneg %p136
        $region18: #{tpu_custom_call.1} parent=11 // pred_check_branch
          %436 = sbr.rel (%p434) target = $region20
        $region19: #{tpu_custom_call.1} parent=11 // pred_region
          _
        $region20: #{tpu_custom_call.1} parent=11 // pred_fallthru
          _
        // Predicated region
        $region21: #{tpu_custom_call.1} parent=11 // pred_check
          %p437 = pneg %p157
        $region22: #{tpu_custom_call.1} parent=11 // pred_check_branch
          %439 = sbr.rel (%p437) target = $region24
        $region23: #{tpu_custom_call.1} parent=11 // pred_region
          %s441 = ssub.s32 256, 256
          %442 = vsyncadd [#allocation4], %s441
          %s443 = sshll.u32 [#allocation3], 4
          %s444 = int_to_ptr.vmem [resolvable:$true] %s443
          %449 = dma.hbm_to_vmem [thread:$0]  %s4, 256, %s444, [#allocation4], 64, 64, 4
        $region24: #{tpu_custom_call.1} parent=11 // pred_fallthru
          _
        // Predicated region
        $region25: #{tpu_custom_call.1} parent=11 // pred_check
          %p450 = pneg %p178
        $region26: #{tpu_custom_call.1} parent=11 // pred_check_branch
          %452 = sbr.rel (%p450) target = $region28
        $region27: #{tpu_custom_call.1} parent=11 // pred_region
          _
        $region28: #{tpu_custom_call.1} parent=11 // pred_fallthru
          _
        // Predicated region
        $region29: #{tpu_custom_call.1} parent=11 // pred_check
          %p453 = pneg %p199
        $region30: #{tpu_custom_call.1} parent=11 // pred_check_branch
          %455 = sbr.rel (%p453) target = $region32
        $region31: #{tpu_custom_call.1} parent=11 // pred_region
          %s457 = ssub.s32 256, 256
          %458 = vsyncadd [#allocation7], %s457
          %s459 = sshll.u32 [#allocation6], 4
          %s460 = int_to_ptr.vmem [resolvable:$true] %s459
          %465 = dma.hbm_to_vmem [thread:$0]  %s6, 256, %s460, [#allocation7], 64, 64, 4
        $region32: #{tpu_custom_call.1} parent=11 // pred_fallthru
          _
        // Predicated region
        $region33: #{tpu_custom_call.1} parent=11 // pred_check
          %p466 = pneg %p220
        $region34: #{tpu_custom_call.1} parent=11 // pred_check_branch
          %468 = sbr.rel (%p466) target = $region36
        $region35: #{tpu_custom_call.1} parent=11 // pred_region
          %s470 = ssub.s32 16, 16
          %471 = vsyncadd [#allocation7], %s470
          %s473 = sshll.u32 [#allocation8], 4
          %s474 = int_to_ptr.vmem [resolvable:$true] %s473
          %476 = dma.hbm_to_vmem [thread:$0]  %s7, 16, %s474, [#allocation7]
        $region36: #{tpu_custom_call.1} parent=11 // pred_fallthru
          _
        // Predicated region
        $region37: #{tpu_custom_call.1} parent=11 // pred_check
          %p477 = pneg %p241
        $region38: #{tpu_custom_call.1} parent=11 // pred_check_branch
          %479 = sbr.rel (%p477) target = $region40
        $region39: #{tpu_custom_call.1} parent=11 // pred_region
          %s481 = ssub.s32 16, 16
          %482 = vsyncadd [#allocation10], %s481
          %s484 = sshll.u32 [#allocation9], 4
          %s485 = int_to_ptr.vmem [resolvable:$true] %s484
          %487 = dma.hbm_to_vmem [thread:$0]  %s8, 16, %s485, [#allocation10]
        $region40: #{tpu_custom_call.1} parent=11 // pred_fallthru
          _
        // Predicated region
        $region41: #{tpu_custom_call.1} parent=11 // pred_check
          %p488 = pneg %p262
        $region42: #{tpu_custom_call.1} parent=11 // pred_check_branch
          %490 = sbr.rel (%p488) target = $region44
        $region43: #{tpu_custom_call.1} parent=11 // pred_region
          %s492 = ssub.s32 16, 16
          %493 = vsyncadd [#allocation10], %s492
          %s495 = sshll.u32 [#allocation11], 4
          %s496 = int_to_ptr.vmem [resolvable:$true] %s495
          %498 = dma.hbm_to_vmem [thread:$0]  %s9, 16, %s496, [#allocation10]
        $region44: #{tpu_custom_call.1} parent=11 // pred_fallthru
          _
        // Predicated region
        $region45: #{tpu_custom_call.1} parent=11 // pred_check
          %p499 = pneg %p283
        $region46: #{tpu_custom_call.1} parent=11 // pred_check_branch
          %501 = sbr.rel (%p499) target = $region48
        $region47: #{tpu_custom_call.1} parent=11 // pred_region
          _
        $region48: #{tpu_custom_call.1} parent=11 // pred_fallthru
          _
        // Predicated region
        $region49: #{tpu_custom_call.1} parent=11 // pred_check
          %p502 = pneg %p304
        $region50: #{tpu_custom_call.1} parent=11 // pred_check_branch
          %504 = sbr.rel (%p502) target = $region52
        $region51: #{tpu_custom_call.1} parent=11 // pred_region
          _
        $region52: #{tpu_custom_call.1} parent=11 // pred_fallthru
          _
        // Predicated region
        $region53: #{tpu_custom_call.1} parent=11 // pred_check
          %p505 = pneg %p325
        $region54: #{tpu_custom_call.1} parent=11 // pred_check_branch
          %507 = sbr.rel (%p505) target = $region56
        $region55: #{tpu_custom_call.1} parent=11 // pred_region
          _
        $region56: #{tpu_custom_call.1} parent=11 // pred_fallthru
          _
        // Predicated region
        $region57: #{tpu_custom_call.1} parent=11 // pred_check
          %p508 = pneg %p346
        $region58: #{tpu_custom_call.1} parent=11 // pred_check_branch
          %510 = sbr.rel (%p508) target = $region60
        $region59: #{tpu_custom_call.1} parent=11 // pred_region
          _
        $region60: #{tpu_custom_call.1} parent=11 // pred_fallthru
          _
        // Predicated region
        $region61: #{tpu_custom_call.1} parent=11 // pred_check
          %p511 = pneg %p367
        $region62: #{tpu_custom_call.1} parent=11 // pred_check_branch
          %513 = sbr.rel (%p511) target = $region64
        $region63: #{tpu_custom_call.1} parent=11 // pred_region
          _
        $region64: #{tpu_custom_call.1} parent=11 // pred_fallthru
          _
        // Predicated region
        $region65: #{tpu_custom_call.1} parent=11 // pred_check
          %p514 = pneg %p388
        $region66: #{tpu_custom_call.1} parent=11 // pred_check_branch
          %516 = sbr.rel (%p514) target = $region68
        $region67: #{tpu_custom_call.1} parent=11 // pred_region
          _
        $region68: #{tpu_custom_call.1} parent=11 // pred_fallthru
          _
      $region12: #{tpu_custom_call.1} parent=5 // pred_fallthru
        _
      %p517 = scmp.lt.s32.totalorder %s28, 2
      // Predicated region
      $region69: #{tpu_custom_call.1} parent=5 // pred_check
        %p518 = pneg %p517
      $region70: #{tpu_custom_call.1} parent=5 // pred_check_branch
        %520 = sbr.rel (%p518) target = $region72
      $region71: #{tpu_custom_call.1} parent=5 // pred_region
        // Predicated region
        $region73: #{tpu_custom_call.1} parent=71 // pred_check
          %p521 = pneg %p62
        $region74: #{tpu_custom_call.1} parent=71 // pred_check_branch
          %523 = sbr.rel (%p521) target = $region76
        $region75: #{tpu_custom_call.1} parent=71 // pred_region
          %p524 = scmp.lt.s32.totalorder %s35, 1
          %s525 = scalar_select %p524, %s35, 1
          %p526 = scmp.lt.s32.totalorder %s36, 0
          %s527 = scalar_select %p526, %s36, 0
          %s528 = sadd.s32 %s527, %s525
          %s529 = smul.addr %s528, 8
          %s530 = scalar_lea.vmem %s0, %s529
        $region76: #{tpu_custom_call.1} parent=71 // pred_fallthru
          _
        // Predicated region
        $region77: #{tpu_custom_call.1} parent=71 // pred_check
          %p531 = pneg %p88
        $region78: #{tpu_custom_call.1} parent=71 // pred_check_branch
          %533 = sbr.rel (%p531) target = $region80
        $region79: #{tpu_custom_call.1} parent=71 // pred_region
          %p534 = scmp.lt.s32.totalorder %s35, 1
          %s535 = scalar_select %p534, %s35, 1
          %s536 = smul.addr %s535, 8
          %s537 = scalar_lea.vmem %s1, %s536
        $region80: #{tpu_custom_call.1} parent=71 // pred_fallthru
          _
      $region72: #{tpu_custom_call.1} parent=5 // pred_fallthru
        _
      %p538 = scmp.le.s32.totalorder 1, %s28
      %p539 = scmp.lt.s32.totalorder %s28, 3
      %p540 = pnand %p538, %p539
      %p541 = pneg %p540
      // Predicated region
      $region81: #{tpu_custom_call.1} parent=5 // pred_check
        _
      $region82: #{tpu_custom_call.1} parent=5 // pred_check_branch
        %543 = sbr.rel (%p540) target = $region84
      $region83: #{tpu_custom_call.1} parent=5 // pred_region
        %s544 = ssub.s32 %s28, 1
        // Predicated region
        $region85: #{tpu_custom_call.1} parent=83 // pred_check
          %p545 = pneg %p157
        $region86: #{tpu_custom_call.1} parent=83 // pred_check_branch
          %547 = sbr.rel (%p545) target = $region88
        $region87: #{tpu_custom_call.1} parent=83 // pred_region
          %548 = dma.done [#allocation4], 256
        $region88: #{tpu_custom_call.1} parent=83 // pred_fallthru
          _
        // Predicated region
        $region89: #{tpu_custom_call.1} parent=83 // pred_check
          %p549 = pneg %p199
        $region90: #{tpu_custom_call.1} parent=83 // pred_check_branch
          %551 = sbr.rel (%p549) target = $region92
        $region91: #{tpu_custom_call.1} parent=83 // pred_region
          %552 = dma.done [#allocation7], 256
        $region92: #{tpu_custom_call.1} parent=83 // pred_fallthru
          _
        // Predicated region
        $region93: #{tpu_custom_call.1} parent=83 // pred_check
          %p553 = pneg %p220
        $region94: #{tpu_custom_call.1} parent=83 // pred_check_branch
          %555 = sbr.rel (%p553) target = $region96
        $region95: #{tpu_custom_call.1} parent=83 // pred_region
          %556 = dma.done [#allocation7], 16
        $region96: #{tpu_custom_call.1} parent=83 // pred_fallthru
          _
        // Predicated region
        $region97: #{tpu_custom_call.1} parent=83 // pred_check
          %p557 = pneg %p241
        $region98: #{tpu_custom_call.1} parent=83 // pred_check_branch
          %559 = sbr.rel (%p557) target = $region100
        $region99: #{tpu_custom_call.1} parent=83 // pred_region
          %560 = dma.done [#allocation10], 16
        $region100: #{tpu_custom_call.1} parent=83 // pred_fallthru
          _
        // Predicated region
        $region101: #{tpu_custom_call.1} parent=83 // pred_check
          %p561 = pneg %p262
        $region102: #{tpu_custom_call.1} parent=83 // pred_check_branch
          %563 = sbr.rel (%p561) target = $region104
        $region103: #{tpu_custom_call.1} parent=83 // pred_region
          %564 = dma.done [#allocation10], 16
        $region104: #{tpu_custom_call.1} parent=83 // pred_fallthru
          _
        %p565 = scmp.lt.s32.totalorder %s37, 1
        %s566 = scalar_select %p565, %s37, 1
        %p567 = scmp.lt.s32.totalorder %s38, 0
        %s568 = scalar_select %p567, %s38, 0
        %s569 = sadd.s32 %s568, %s566
        %s570 = smul.addr %s569, 8
        %s571 = scalar_lea.vmem %s0, %s570
        %p572 = pneg %p68
        %p573 = pneg %p65
        %p574 = scmp.lt.s32.totalorder %s37, 1
        %s575 = scalar_select %p574, %s37, 1
        %s576 = smul.addr %s575, 8
        %s577 = scalar_lea.vmem %s1, %s576
        %p578 = pneg %p94
        %p579 = pneg %p91
        %p580 = pneg %p115
        %p581 = pneg %p112
        %p582 = pneg %p136
        %p583 = pneg %p133
        %p584 = pneg %p157
        %p585 = pneg %p154
        %p586 = pneg %p178
        %p587 = pneg %p175
        %p588 = pneg %p199
        %p589 = pneg %p196
        %p590 = pneg %p220
        %p591 = pneg %p217
        %p592 = pneg %p241
        %p593 = pneg %p238
        %p594 = pneg %p262
        %p595 = pneg %p259
        %p596 = pneg %p283
        %p597 = pneg %p280
        %p598 = pneg %p304
        %p599 = pneg %p301
        %p600 = pneg %p325
        %p601 = pneg %p322
        %p602 = pneg %p346
        %p603 = pneg %p343
        %p604 = pneg %p367
        %p605 = pneg %p364
        %p606 = pneg %p388
        %p607 = pneg %p385
        %p608 = pneg %p416
        %p609 = pneg %p413
        %s610 = sand.u32 %s403, 1
        %s611 = scalar_lea.sflag [#allocation5], %s610
        %s612 = sand.u32 %s403, 1
        %s613 = smul.addr %s612, 8
        %s614 = scalar_lea.vmem [#allocation12], %s613
        %p615 = scmp.lt.s32.totalorder %s37, 1
        %s616 = scalar_select %p615, %s37, 1
        %p617 = scmp.lt.s32.totalorder %s38, 0
        %s618 = scalar_select %p617, %s38, 0
        %s619 = sadd.s32 %s618, %s616
        %s620 = smul.addr %s619, 8
        %s621 = scalar_lea.vmem %s0, %s620
        %p622 = scmp.lt.s32.totalorder %s37, 1
        %s623 = scalar_select %p622, %s37, 1
        %s624 = smul.addr %s623, 8
        %s625 = scalar_lea.vmem %s1, %s624
        %v627 = vld [vmem:[%s621] sm:$0xff]
        %v628 = vld [vmem:[%s625] sm:$0xff]
        %v629 = vpack.c.bf16 %v627, %v627
        %v630 = vld [vmem:[%s2] sm:$0xf]
        %v631 = vld [vmem:[%s2 + $0x4] sm:$0xf]
        %v632 = vld [vmem:[%s2 + $0x8] sm:$0xf]
        %v633 = vld [vmem:[%s2 + $0xc] sm:$0xf]
        %v634 = vld [vmem:[%s3] sm:$0x1]
        %v636 = vlaneseq
        %v637 = vshrl.u32 %v636, 7
        %v638 = vsub.s32 0, %v637
        %v639 = vrot.slane %v634, %v638
        %v645 = vunpack.c.l.b16 %v630
        %v646 = vunpack.c.l.b16 %v631
        %v647 = vunpack.c.l.b16 %v632
        %v648 = vunpack.c.l.b16 %v633
        %v649 = vpack.c.b16 %v646, %v645
        %v650 = vpack.c.b16 %v648, %v647
        %vm653 = vcmask 261120
        %v655 = vsel %vm653, %v629, 0
        %657 = vmatprep.subr.bf16.mxu0 0
        %658 = vmatpush1.bf16.msra.mxu0 %v649
        %659 = vmatprep.subr.bf16.mxu0 0
        %660 = vmatpush1.bf16.msra.mxu0 %v650
        %661 = vmatprep.subr.bf16.mxu0 0
        %662 = vmatpush1.bf16.msra.mxu0 0
        %663 = vmatprep.subr.bf16.mxu0 0
        %664 = vmatpush1.bf16.msra.mxu0 0
        %665 = vmatprep.subr.bf16.mxu0 0
        %666 = vmatpush1.bf16.msra.mxu0 0
        %667 = vmatprep.subr.bf16.mxu0 0
        %668 = vmatpush1.bf16.msra.mxu0 0
        %669 = vmatprep.subr.bf16.mxu0 0
        %670 = vmatpush1.bf16.msra.mxu0 0
        %671 = vmatprep.subr.bf16.mxu0 0
        %672 = vmatpush1.bf16.msra.mxu0 0
        %673 = vmatprep.subr.bf16.mxu0 0
        %674 = vmatpush1.bf16.msra.mxu0 0
        %675 = vmatprep.subr.bf16.mxu0 0
        %676 = vmatpush1.bf16.msra.mxu0 0
        %677 = vmatprep.subr.bf16.mxu0 0
        %678 = vmatpush1.bf16.msra.mxu0 0
        %679 = vmatprep.subr.bf16.mxu0 0
        %680 = vmatpush1.bf16.msra.mxu0 0
        %681 = vmatprep.subr.bf16.mxu0 0
        %682 = vmatpush1.bf16.msra.mxu0 0
        %683 = vmatprep.subr.bf16.mxu0 0
        %684 = vmatpush1.bf16.msra.mxu0 0
        %685 = vmatprep.subr.bf16.mxu0 0
        %686 = vmatpush1.bf16.msra.mxu0 0
        %687 = vmatprep.subr.bf16.mxu0 0
        %688 = vmatpush1.bf16.msra.mxu0 0
        %689 = vmatprep.mubr.bf16.mxu0 0
        %690 = vmatmul.mubr.bf16.gmra.mrb[0].mxu0 %v655
        %v691 = vpop.f32.mrb[0].mxu0
        %v692 = vadd.f32 %v639, %v691
        %v693 = vpop.f32.mrb[0].mxu0
        %v694 = vpop.f32.mrb[0].mxu0
        %v695 = vpop.f32.mrb[0].mxu0
        %696 = vdwg.mxu0
        %v697 = vpack.c.bf16 %v628, %v628
        %v698 = vld [vmem:[#allocation3] sm:$0xf]
        %v699 = vld [vmem:[#allocation3 + $0x4] sm:$0xf]
        %v700 = vld [vmem:[#allocation3 + $0x8] sm:$0xf]
        %v701 = vld [vmem:[#allocation3 + $0xc] sm:$0xf]
        %v702 = vld [vmem:[%s5] sm:$0x1]
        %v704 = vlaneseq
        %v705 = vshrl.u32 %v704, 7
        %v706 = vsub.s32 0, %v705
        %v707 = vrot.slane %v702, %v706
        %v713 = vunpack.c.l.b16 %v698
        %v714 = vunpack.c.l.b16 %v699
        %v715 = vunpack.c.l.b16 %v700
        %v716 = vunpack.c.l.b16 %v701
        %v717 = vpack.c.b16 %v714, %v713
        %v718 = vpack.c.b16 %v716, %v715
        %v722 = vsel %vm653, %v697, 0
        %724 = vmatprep.subr.bf16.mxu0 0
        %725 = vmatpush1.bf16.msra.mxu0 %v717
        %726 = vmatprep.subr.bf16.mxu0 0
        %727 = vmatpush1.bf16.msra.mxu0 %v718
        %728 = vmatprep.subr.bf16.mxu0 0
        %729 = vmatpush1.bf16.msra.mxu0 0
        %730 = vmatprep.subr.bf16.mxu0 0
        %731 = vmatpush1.bf16.msra.mxu0 0
        %732 = vmatprep.subr.bf16.mxu0 0
        %733 = vmatpush1.bf16.msra.mxu0 0
        %734 = vmatprep.subr.bf16.mxu0 0
        %735 = vmatpush1.bf16.msra.mxu0 0
        %736 = vmatprep.subr.bf16.mxu0 0
        %737 = vmatpush1.bf16.msra.mxu0 0
        %738 = vmatprep.subr.bf16.mxu0 0
        %739 = vmatpush1.bf16.msra.mxu0 0
        %740 = vmatprep.subr.bf16.mxu0 0
        %741 = vmatpush1.bf16.msra.mxu0 0
        %742 = vmatprep.subr.bf16.mxu0 0
        %743 = vmatpush1.bf16.msra.mxu0 0
        %744 = vmatprep.subr.bf16.mxu0 0
        %745 = vmatpush1.bf16.msra.mxu0 0
        %746 = vmatprep.subr.bf16.mxu0 0
        %747 = vmatpush1.bf16.msra.mxu0 0
        %748 = vmatprep.subr.bf16.mxu0 0
        %749 = vmatpush1.bf16.msra.mxu0 0
        %750 = vmatprep.subr.bf16.mxu0 0
        %751 = vmatpush1.bf16.msra.mxu0 0
        %752 = vmatprep.subr.bf16.mxu0 0
        %753 = vmatpush1.bf16.msra.mxu0 0
        %754 = vmatprep.subr.bf16.mxu0 0
        %755 = vmatpush1.bf16.msra.mxu0 0
        %756 = vmatprep.mubr.bf16.mxu0 0
        %757 = vmatmul.mubr.bf16.gmra.mrb[0].mxu0 %v722
        %v758 = vpop.f32.mrb[0].mxu0
        %v759 = vadd.f32 %v707, %v758
        %v760 = vpop.f32.mrb[0].mxu0
        %v761 = vpop.f32.mrb[0].mxu0
        %v762 = vpop.f32.mrb[0].mxu0
        %763 = vdwg.mxu0
        %v764 = vpack.c.bf16 %v692, %v692
        %v765 = vpack.c.bf16 %v759, %v759
        %vm766 = vcmask 64512
        %v768 = vsel %vm766, %v764, 0
        %v771 = vsel %vm766, %v765, 0
        %773 = vmatprep.subr.bf16.mxu0 0
        %774 = vmatpush1.bf16.xpose.msra.mxu0 %v771
        %775 = vmatprep.subr.bf16.mxu0 0
        %776 = vmatpush1.bf16.xpose.msra.mxu0 0
        %777 = vmatprep.subr.bf16.mxu0 0
        %778 = vmatpush1.bf16.xpose.msra.mxu0 0
        %779 = vmatprep.subr.bf16.mxu0 0
        %780 = vmatpush1.bf16.xpose.msra.mxu0 0
        %781 = vmatprep.subr.bf16.mxu0 0
        %782 = vmatpush1.bf16.xpose.msra.mxu0 0
        %783 = vmatprep.subr.bf16.mxu0 0
        %784 = vmatpush1.bf16.xpose.msra.mxu0 0
        %785 = vmatprep.subr.bf16.mxu0 0
        %786 = vmatpush1.bf16.xpose.msra.mxu0 0
        %787 = vmatprep.subr.bf16.mxu0 0
        %788 = vmatpush1.bf16.xpose.msra.mxu0 0
        %789 = vmatprep.subr.bf16.mxu0 0
        %790 = vmatpush1.bf16.xpose.msra.mxu0 0
        %791 = vmatprep.subr.bf16.mxu0 0
        %792 = vmatpush1.bf16.xpose.msra.mxu0 0
        %793 = vmatprep.subr.bf16.mxu0 0
        %794 = vmatpush1.bf16.xpose.msra.mxu0 0
        %795 = vmatprep.subr.bf16.mxu0 0
        %796 = vmatpush1.bf16.xpose.msra.mxu0 0
        %797 = vmatprep.subr.bf16.mxu0 0
        %798 = vmatpush1.bf16.xpose.msra.mxu0 0
        %799 = vmatprep.subr.bf16.mxu0 0
        %800 = vmatpush1.bf16.xpose.msra.mxu0 0
        %801 = vmatprep.subr.bf16.mxu0 0
        %802 = vmatpush1.bf16.xpose.msra.mxu0 0
        %803 = vmatprep.subr.bf16.mxu0 0
        %804 = vmatpush1.bf16.xpose.msra.mxu0 0
        %805 = vmatprep.mubr.bf16.mxu0 0
        %806 = vmatmul.mubr.bf16.gmra.mrb[0].mxu0 %v768
        %v807 = vpop.f32.mrb[0].mxu0
        %v808 = vadd.f32 0.0, %v807
        %v809 = vpop.f32.mrb[0].mxu0
        %v810 = vpop.f32.mrb[0].mxu0
        %v811 = vpop.f32.mrb[0].mxu0
        %812 = vdwg.mxu0
        %v813 = vmul.f32 %v808, 0.35355338
        %v814 = vsel %vm766, %v813, -inf
        %815 = vmax.xlane.f32.xlu0 %v814
        %v816 = vpop.xlane.xlu0 %815
        %v817 = vsub.f32 %v813, %v816
        %v818 = vmul.f32 %v817, 1.442695
        %v819 = vpow.pop %v818
        %v820 = vsel %vm766, %v819, 0.0
        %821 = vadd.xlane.f32.xlu0 %v820
        %v822 = vpop.xlane.xlu0 %821
        %v823 = vrcp.pop %v822
        %v824 = vmul.f32 %v819, %v823
        %v825 = vpack.c.bf16 %v824, %v824
        %827 = vrot.lane.b32.xlu0 %v765, 96
        %v828 = vpop.permute.xlu0 %827
        %v830 = vsel %vm766, %v825, 0
        %vm832 = vcmask 1043456
        %v834 = vsel %vm832, %v828, 0
        %836 = vmatprep.subr.bf16.mxu0 0
        %837 = vmatpush1.bf16.msra.mxu0 %v834
        %838 = vmatprep.subr.bf16.mxu0 0
        %839 = vmatpush1.bf16.msra.mxu0 0
        %840 = vmatprep.subr.bf16.mxu0 0
        %841 = vmatpush1.bf16.msra.mxu0 0
        %842 = vmatprep.subr.bf16.mxu0 0
        %843 = vmatpush1.bf16.msra.mxu0 0
        %844 = vmatprep.subr.bf16.mxu0 0
        %845 = vmatpush1.bf16.msra.mxu0 0
        %846 = vmatprep.subr.bf16.mxu0 0
        %847 = vmatpush1.bf16.msra.mxu0 0
        %848 = vmatprep.subr.bf16.mxu0 0
        %849 = vmatpush1.bf16.msra.mxu0 0
        %850 = vmatprep.subr.bf16.mxu0 0
        %851 = vmatpush1.bf16.msra.mxu0 0
        %852 = vmatprep.subr.bf16.mxu0 0
        %853 = vmatpush1.bf16.msra.mxu0 0
        %854 = vmatprep.subr.bf16.mxu0 0
        %855 = vmatpush1.bf16.msra.mxu0 0
        %856 = vmatprep.subr.bf16.mxu0 0
        %857 = vmatpush1.bf16.msra.mxu0 0
        %858 = vmatprep.subr.bf16.mxu0 0
        %859 = vmatpush1.bf16.msra.mxu0 0
        %860 = vmatprep.subr.bf16.mxu0 0
        %861 = vmatpush1.bf16.msra.mxu0 0
        %862 = vmatprep.subr.bf16.mxu0 0
        %863 = vmatpush1.bf16.msra.mxu0 0
        %864 = vmatprep.subr.bf16.mxu0 0
        %865 = vmatpush1.bf16.msra.mxu0 0
        %866 = vmatprep.subr.bf16.mxu0 0
        %867 = vmatpush1.bf16.msra.mxu0 0
        %868 = vmatprep.mubr.bf16.mxu0 0
        %869 = vmatmul.mubr.bf16.gmra.mrb[0].mxu0 %v830
        %v870 = vpop.f32.mrb[0].mxu0
        %v871 = vadd.f32 0.0, %v870
        %v872 = vpop.f32.mrb[0].mxu0
        %v873 = vpop.f32.mrb[0].mxu0
        %v874 = vpop.f32.mrb[0].mxu0
        %875 = vdwg.mxu0
        %v876 = vpack.c.bf16 %v871, %v871
        %vm877 = vcmask 60416
        %878 = vst.msk [vmem:[#allocation2] sm:$0xf] %vm877, %v876
        %880 = vrot.lane.b32.xlu0 %v764, 120
        %v881 = vpop.permute.xlu0 %880
        %882 = vrot.lane.b32.xlu0 %v765, 120
        %v883 = vpop.permute.xlu0 %882
        %v885 = vsel %vm766, %v881, 0
        %v888 = vsel %vm766, %v883, 0
        %890 = vmatprep.subr.bf16.mxu0 0
        %891 = vmatpush1.bf16.xpose.msra.mxu0 %v888
        %892 = vmatprep.subr.bf16.mxu0 0
        %893 = vmatpush1.bf16.xpose.msra.mxu0 0
        %894 = vmatprep.subr.bf16.mxu0 0
        %895 = vmatpush1.bf16.xpose.msra.mxu0 0
        %896 = vmatprep.subr.bf16.mxu0 0
        %897 = vmatpush1.bf16.xpose.msra.mxu0 0
        %898 = vmatprep.subr.bf16.mxu0 0
        %899 = vmatpush1.bf16.xpose.msra.mxu0 0
        %900 = vmatprep.subr.bf16.mxu0 0
        %901 = vmatpush1.bf16.xpose.msra.mxu0 0
        %902 = vmatprep.subr.bf16.mxu0 0
        %903 = vmatpush1.bf16.xpose.msra.mxu0 0
        %904 = vmatprep.subr.bf16.mxu0 0
        %905 = vmatpush1.bf16.xpose.msra.mxu0 0
        %906 = vmatprep.subr.bf16.mxu0 0
        %907 = vmatpush1.bf16.xpose.msra.mxu0 0
        %908 = vmatprep.subr.bf16.mxu0 0
        %909 = vmatpush1.bf16.xpose.msra.mxu0 0
        %910 = vmatprep.subr.bf16.mxu0 0
        %911 = vmatpush1.bf16.xpose.msra.mxu0 0
        %912 = vmatprep.subr.bf16.mxu0 0
        %913 = vmatpush1.bf16.xpose.msra.mxu0 0
        %914 = vmatprep.subr.bf16.mxu0 0
        %915 = vmatpush1.bf16.xpose.msra.mxu0 0
        %916 = vmatprep.subr.bf16.mxu0 0
        %917 = vmatpush1.bf16.xpose.msra.mxu0 0
        %918 = vmatprep.subr.bf16.mxu0 0
        %919 = vmatpush1.bf16.xpose.msra.mxu0 0
        %920 = vmatprep.subr.bf16.mxu0 0
        %921 = vmatpush1.bf16.xpose.msra.mxu0 0
        %922 = vmatprep.mubr.bf16.mxu0 0
        %923 = vmatmul.mubr.bf16.gmra.mrb[0].mxu0 %v885
        %v924 = vpop.f32.mrb[0].mxu0
        %v925 = vadd.f32 0.0, %v924
        %v926 = vpop.f32.mrb[0].mxu0
        %v927 = vpop.f32.mrb[0].mxu0
        %v928 = vpop.f32.mrb[0].mxu0
        %929 = vdwg.mxu0
        %v930 = vmul.f32 %v925, 0.35355338
        %v931 = vsel %vm766, %v930, -inf
        %932 = vmax.xlane.f32.xlu0 %v931
        %v933 = vpop.xlane.xlu0 %932
        %v934 = vsub.f32 %v930, %v933
        %v935 = vmul.f32 %v934, 1.442695
        %v936 = vpow.pop %v935
        %v937 = vsel %vm766, %v936, 0.0
        %938 = vadd.xlane.f32.xlu0 %v937
        %v939 = vpop.xlane.xlu0 %938
        %v940 = vrcp.pop %v939
        %v941 = vmul.f32 %v936, %v940
        %v942 = vpack.c.bf16 %v941, %v941
        %943 = vrot.lane.b32.xlu0 %v765, 88
        %v944 = vpop.permute.xlu0 %943
        %v946 = vsel %vm766, %v942, 0
        %v949 = vsel %vm832, %v944, 0
        %951 = vmatprep.subr.bf16.mxu0 0
        %952 = vmatpush1.bf16.msra.mxu0 %v949
        %953 = vmatprep.subr.bf16.mxu0 0
        %954 = vmatpush1.bf16.msra.mxu0 0
        %955 = vmatprep.subr.bf16.mxu0 0
        %956 = vmatpush1.bf16.msra.mxu0 0
        %957 = vmatprep.subr.bf16.mxu0 0
        %958 = vmatpush1.bf16.msra.mxu0 0
        %959 = vmatprep.subr.bf16.mxu0 0
        %960 = vmatpush1.bf16.msra.mxu0 0
        %961 = vmatprep.subr.bf16.mxu0 0
        %962 = vmatpush1.bf16.msra.mxu0 0
        %963 = vmatprep.subr.bf16.mxu0 0
        %964 = vmatpush1.bf16.msra.mxu0 0
        %965 = vmatprep.subr.bf16.mxu0 0
        %966 = vmatpush1.bf16.msra.mxu0 0
        %967 = vmatprep.subr.bf16.mxu0 0
        %968 = vmatpush1.bf16.msra.mxu0 0
        %969 = vmatprep.subr.bf16.mxu0 0
        %970 = vmatpush1.bf16.msra.mxu0 0
        %971 = vmatprep.subr.bf16.mxu0 0
        %972 = vmatpush1.bf16.msra.mxu0 0
        %973 = vmatprep.subr.bf16.mxu0 0
        %974 = vmatpush1.bf16.msra.mxu0 0
        %975 = vmatprep.subr.bf16.mxu0 0
        %976 = vmatpush1.bf16.msra.mxu0 0
        %977 = vmatprep.subr.bf16.mxu0 0
        %978 = vmatpush1.bf16.msra.mxu0 0
        %979 = vmatprep.subr.bf16.mxu0 0
        %980 = vmatpush1.bf16.msra.mxu0 0
        %981 = vmatprep.subr.bf16.mxu0 0
        %982 = vmatpush1.bf16.msra.mxu0 0
        %983 = vmatprep.mubr.bf16.mxu0 0
        %984 = vmatmul.mubr.bf16.gmra.mrb[0].mxu0 %v946
        %v985 = vpop.f32.mrb[0].mxu0
        %v986 = vadd.f32 0.0, %v985
        %v987 = vpop.f32.mrb[0].mxu0
        %v988 = vpop.f32.mrb[0].mxu0
        %v989 = vpop.f32.mrb[0].mxu0
        %990 = vdwg.mxu0
        %v991 = vpack.c.bf16 %v986, %v986
        %v993 = vunpack.c.l.b16 %v991
        %v994 = vpack.c.b16 %v993, %v993
        %995 = vrot.lane.b32.xlu0 %v994, 8
        %v996 = vpop.permute.xlu0 %995
        %vm998 = vcmask 126016
        %999 = vst.msk [vmem:[#allocation2] sm:$0xf] %vm998, %v996
        %1000 = vrot.lane.b32.xlu0 %v764, 112
        %v1001 = vpop.permute.xlu0 %1000
        %1002 = vrot.lane.b32.xlu0 %v765, 112
        %v1003 = vpop.permute.xlu0 %1002
        %v1005 = vsel %vm766, %v1001, 0
        %v1008 = vsel %vm766, %v1003, 0
        %1010 = vmatprep.subr.bf16.mxu0 0
        %1011 = vmatpush1.bf16.xpose.msra.mxu0 %v1008
        %1012 = vmatprep.subr.bf16.mxu0 0
        %1013 = vmatpush1.bf16.xpose.msra.mxu0 0
        %1014 = vmatprep.subr.bf16.mxu0 0
        %1015 = vmatpush1.bf16.xpose.msra.mxu0 0
        %1016 = vmatprep.subr.bf16.mxu0 0
        %1017 = vmatpush1.bf16.xpose.msra.mxu0 0
        %1018 = vmatprep.subr.bf16.mxu0 0
        %1019 = vmatpush1.bf16.xpose.msra.mxu0 0
        %1020 = vmatprep.subr.bf16.mxu0 0
        %1021 = vmatpush1.bf16.xpose.msra.mxu0 0
        %1022 = vmatprep.subr.bf16.mxu0 0
        %1023 = vmatpush1.bf16.xpose.msra.mxu0 0
        %1024 = vmatprep.subr.bf16.mxu0 0
        %1025 = vmatpush1.bf16.xpose.msra.mxu0 0
        %1026 = vmatprep.subr.bf16.mxu0 0
        %1027 = vmatpush1.bf16.xpose.msra.mxu0 0
        %1028 = vmatprep.subr.bf16.mxu0 0
        %1029 = vmatpush1.bf16.xpose.msra.mxu0 0
        %1030 = vmatprep.subr.bf16.mxu0 0
        %1031 = vmatpush1.bf16.xpose.msra.mxu0 0
        %1032 = vmatprep.subr.bf16.mxu0 0
        %1033 = vmatpush1.bf16.xpose.msra.mxu0 0
        %1034 = vmatprep.subr.bf16.mxu0 0
        %1035 = vmatpush1.bf16.xpose.msra.mxu0 0
        %1036 = vmatprep.subr.bf16.mxu0 0
        %1037 = vmatpush1.bf16.xpose.msra.mxu0 0
        %1038 = vmatprep.subr.bf16.mxu0 0
        %1039 = vmatpush1.bf16.xpose.msra.mxu0 0
        %1040 = vmatprep.subr.bf16.mxu0 0
        %1041 = vmatpush1.bf16.xpose.msra.mxu0 0
        %1042 = vmatprep.mubr.bf16.mxu0 0
        %1043 = vmatmul.mubr.bf16.gmra.mrb[0].mxu0 %v1005
        %v1044 = vpop.f32.mrb[0].mxu0
        %v1045 = vadd.f32 0.0, %v1044
        %v1046 = vpop.f32.mrb[0].mxu0
        %v1047 = vpop.f32.mrb[0].mxu0
        %v1048 = vpop.f32.mrb[0].mxu0
        %1049 = vdwg.mxu0
        %v1050 = vmul.f32 %v1045, 0.35355338
        %v1051 = vsel %vm766, %v1050, -inf
        %1052 = vmax.xlane.f32.xlu0 %v1051
        %v1053 = vpop.xlane.xlu0 %1052
        %v1054 = vsub.f32 %v1050, %v1053
        %v1055 = vmul.f32 %v1054, 1.442695
        %v1056 = vpow.pop %v1055
        %v1057 = vsel %vm766, %v1056, 0.0
        %1058 = vadd.xlane.f32.xlu0 %v1057
        %v1059 = vpop.xlane.xlu0 %1058
        %v1060 = vrcp.pop %v1059
        %v1061 = vmul.f32 %v1056, %v1060
        %v1062 = vpack.c.bf16 %v1061, %v1061
        %1063 = vrot.lane.b32.xlu0 %v765, 80
        %v1064 = vpop.permute.xlu0 %1063
        %v1066 = vsel %vm766, %v1062, 0
        %v1069 = vsel %vm832, %v1064, 0
        %1071 = vmatprep.subr.bf16.mxu0 0
        %1072 = vmatpush1.bf16.msra.mxu0 %v1069
        %1073 = vmatprep.subr.bf16.mxu0 0
        %1074 = vmatpush1.bf16.msra.mxu0 0
        %1075 = vmatprep.subr.bf16.mxu0 0
        %1076 = vmatpush1.bf16.msra.mxu0 0
        %1077 = vmatprep.subr.bf16.mxu0 0
        %1078 = vmatpush1.bf16.msra.mxu0 0
        %1079 = vmatprep.subr.bf16.mxu0 0
        %1080 = vmatpush1.bf16.msra.mxu0 0
        %1081 = vmatprep.subr.bf16.mxu0 0
        %1082 = vmatpush1.bf16.msra.mxu0 0
        %1083 = vmatprep.subr.bf16.mxu0 0
        %1084 = vmatpush1.bf16.msra.mxu0 0
        %1085 = vmatprep.subr.bf16.mxu0 0
        %1086 = vmatpush1.bf16.msra.mxu0 0
        %1087 = vmatprep.subr.bf16.mxu0 0
        %1088 = vmatpush1.bf16.msra.mxu0 0
        %1089 = vmatprep.subr.bf16.mxu0 0
        %1090 = vmatpush1.bf16.msra.mxu0 0
        %1091 = vmatprep.subr.bf16.mxu0 0
        %1092 = vmatpush1.bf16.msra.mxu0 0
        %1093 = vmatprep.subr.bf16.mxu0 0
        %1094 = vmatpush1.bf16.msra.mxu0 0
        %1095 = vmatprep.subr.bf16.mxu0 0
        %1096 = vmatpush1.bf16.msra.mxu0 0
        %1097 = vmatprep.subr.bf16.mxu0 0
        %1098 = vmatpush1.bf16.msra.mxu0 0
        %1099 = vmatprep.subr.bf16.mxu0 0
        %1100 = vmatpush1.bf16.msra.mxu0 0
        %1101 = vmatprep.subr.bf16.mxu0 0
        %1102 = vmatpush1.bf16.msra.mxu0 0
        %1103 = vmatprep.mubr.bf16.mxu0 0
        %1104 = vmatmul.mubr.bf16.gmra.mrb[0].mxu0 %v1066
        %v1105 = vpop.f32.mrb[0].mxu0
        %v1106 = vadd.f32 0.0, %v1105
        %v1107 = vpop.f32.mrb[0].mxu0
        %v1108 = vpop.f32.mrb[0].mxu0
        %v1109 = vpop.f32.mrb[0].mxu0
        %1110 = vdwg.mxu0
        %v1111 = vpack.c.bf16 %v1106, %v1106
        %v1113 = vunpack.c.l.b16 %v1111
        %v1114 = vpack.c.b16 %v1113, %v1113
        %1115 = vrot.lane.b32.xlu0 %v1114, 16
        %v1116 = vpop.permute.xlu0 %1115
        %vm1118 = vcmask 191616
        %1119 = vst.msk [vmem:[#allocation2] sm:$0xf] %vm1118, %v1116
        %1120 = vrot.lane.b32.xlu0 %v764, 104
        %v1121 = vpop.permute.xlu0 %1120
        %1122 = vrot.lane.b32.xlu0 %v765, 104
        %v1123 = vpop.permute.xlu0 %1122
        %v1125 = vsel %vm766, %v1121, 0
        %v1128 = vsel %vm766, %v1123, 0
        %1130 = vmatprep.subr.bf16.mxu0 0
        %1131 = vmatpush1.bf16.xpose.msra.mxu0 %v1128
        %1132 = vmatprep.subr.bf16.mxu0 0
        %1133 = vmatpush1.bf16.xpose.msra.mxu0 0
        %1134 = vmatprep.subr.bf16.mxu0 0
        %1135 = vmatpush1.bf16.xpose.msra.mxu0 0
        %1136 = vmatprep.subr.bf16.mxu0 0
        %1137 = vmatpush1.bf16.xpose.msra.mxu0 0
        %1138 = vmatprep.subr.bf16.mxu0 0
        %1139 = vmatpush1.bf16.xpose.msra.mxu0 0
        %1140 = vmatprep.subr.bf16.mxu0 0
        %1141 = vmatpush1.bf16.xpose.msra.mxu0 0
        %1142 = vmatprep.subr.bf16.mxu0 0
        %1143 = vmatpush1.bf16.xpose.msra.mxu0 0
        %1144 = vmatprep.subr.bf16.mxu0 0
        %1145 = vmatpush1.bf16.xpose.msra.mxu0 0
        %1146 = vmatprep.subr.bf16.mxu0 0
        %1147 = vmatpush1.bf16.xpose.msra.mxu0 0
        %1148 = vmatprep.subr.bf16.mxu0 0
        %1149 = vmatpush1.bf16.xpose.msra.mxu0 0
        %1150 = vmatprep.subr.bf16.mxu0 0
        %1151 = vmatpush1.bf16.xpose.msra.mxu0 0
        %1152 = vmatprep.subr.bf16.mxu0 0
        %1153 = vmatpush1.bf16.xpose.msra.mxu0 0
        %1154 = vmatprep.subr.bf16.mxu0 0
        %1155 = vmatpush1.bf16.xpose.msra.mxu0 0
        %1156 = vmatprep.subr.bf16.mxu0 0
        %1157 = vmatpush1.bf16.xpose.msra.mxu0 0
        %1158 = vmatprep.subr.bf16.mxu0 0
        %1159 = vmatpush1.bf16.xpose.msra.mxu0 0
        %1160 = vmatprep.subr.bf16.mxu0 0
        %1161 = vmatpush1.bf16.xpose.msra.mxu0 0
        %1162 = vmatprep.mubr.bf16.mxu0 0
        %1163 = vmatmul.mubr.bf16.gmra.mrb[0].mxu0 %v1125
        %v1164 = vpop.f32.mrb[0].mxu0
        %v1165 = vadd.f32 0.0, %v1164
        %v1166 = vpop.f32.mrb[0].mxu0
        %v1167 = vpop.f32.mrb[0].mxu0
        %v1168 = vpop.f32.mrb[0].mxu0
        %1169 = vdwg.mxu0
        %v1170 = vmul.f32 %v1165, 0.35355338
        %v1171 = vsel %vm766, %v1170, -inf
        %1172 = vmax.xlane.f32.xlu0 %v1171
        %v1173 = vpop.xlane.xlu0 %1172
        %v1174 = vsub.f32 %v1170, %v1173
        %v1175 = vmul.f32 %v1174, 1.442695
        %v1176 = vpow.pop %v1175
        %v1177 = vsel %vm766, %v1176, 0.0
        %1178 = vadd.xlane.f32.xlu0 %v1177
        %v1179 = vpop.xlane.xlu0 %1178
        %v1180 = vrcp.pop %v1179
        %v1181 = vmul.f32 %v1176, %v1180
        %v1182 = vpack.c.bf16 %v1181, %v1181
        %1183 = vrot.lane.b32.xlu0 %v765, 72
        %v1184 = vpop.permute.xlu0 %1183
        %v1186 = vsel %vm766, %v1182, 0
        %v1189 = vsel %vm832, %v1184, 0
        %1191 = vmatprep.subr.bf16.mxu0 0
        %1192 = vmatpush1.bf16.msra.mxu0 %v1189
        %1193 = vmatprep.subr.bf16.mxu0 0
        %1194 = vmatpush1.bf16.msra.mxu0 0
        %1195 = vmatprep.subr.bf16.mxu0 0
        %1196 = vmatpush1.bf16.msra.mxu0 0
        %1197 = vmatprep.subr.bf16.mxu0 0
        %1198 = vmatpush1.bf16.msra.mxu0 0
        %1199 = vmatprep.subr.bf16.mxu0 0
        %1200 = vmatpush1.bf16.msra.mxu0 0
        %1201 = vmatprep.subr.bf16.mxu0 0
        %1202 = vmatpush1.bf16.msra.mxu0 0
        %1203 = vmatprep.subr.bf16.mxu0 0
        %1204 = vmatpush1.bf16.msra.mxu0 0
        %1205 = vmatprep.subr.bf16.mxu0 0
        %1206 = vmatpush1.bf16.msra.mxu0 0
        %1207 = vmatprep.subr.bf16.mxu0 0
        %1208 = vmatpush1.bf16.msra.mxu0 0
        %1209 = vmatprep.subr.bf16.mxu0 0
        %1210 = vmatpush1.bf16.msra.mxu0 0
        %1211 = vmatprep.subr.bf16.mxu0 0
        %1212 = vmatpush1.bf16.msra.mxu0 0
        %1213 = vmatprep.subr.bf16.mxu0 0
        %1214 = vmatpush1.bf16.msra.mxu0 0
        %1215 = vmatprep.subr.bf16.mxu0 0
        %1216 = vmatpush1.bf16.msra.mxu0 0
        %1217 = vmatprep.subr.bf16.mxu0 0
        %1218 = vmatpush1.bf16.msra.mxu0 0
        %1219 = vmatprep.subr.bf16.mxu0 0
        %1220 = vmatpush1.bf16.msra.mxu0 0
        %1221 = vmatprep.subr.bf16.mxu0 0
        %1222 = vmatpush1.bf16.msra.mxu0 0
        %1223 = vmatprep.mubr.bf16.mxu0 0
        %1224 = vmatmul.mubr.bf16.gmra.mrb[0].mxu0 %v1186
        %v1225 = vpop.f32.mrb[0].mxu0
        %v1226 = vadd.f32 0.0, %v1225
        %v1227 = vpop.f32.mrb[0].mxu0
        %v1228 = vpop.f32.mrb[0].mxu0
        %v1229 = vpop.f32.mrb[0].mxu0
        %1230 = vdwg.mxu0
        %v1231 = vpack.c.bf16 %v1226, %v1226
        %v1233 = vunpack.c.l.b16 %v1231
        %v1234 = vpack.c.b16 %v1233, %v1233
        %1235 = vrot.lane.b32.xlu0 %v1234, 24
        %v1236 = vpop.permute.xlu0 %1235
        %vm1238 = vcmask 257216
        %1239 = vst.msk [vmem:[#allocation2] sm:$0xf] %vm1238, %v1236
        %v1240 = vld [vmem:[#allocation2] sm:$0xf]
        %v1241 = vld [vmem:[#allocation6] sm:$0xf]
        %v1242 = vld [vmem:[#allocation6 + $0x4] sm:$0xf]
        %v1243 = vld [vmem:[#allocation6 + $0x8] sm:$0xf]
        %v1244 = vld [vmem:[#allocation6 + $0xc] sm:$0xf]
        %v1245 = vld [vmem:[#allocation8] sm:$0x1]
        %v1247 = vlaneseq
        %v1248 = vshrl.u32 %v1247, 7
        %v1249 = vsub.s32 0, %v1248
        %v1250 = vrot.slane %v1245, %v1249
        %v1256 = vunpack.c.l.b16 %v1241
        %v1257 = vunpack.c.l.b16 %v1242
        %v1258 = vunpack.c.l.b16 %v1243
        %v1259 = vunpack.c.l.b16 %v1244
        %v1260 = vpack.c.b16 %v1257, %v1256
        %v1261 = vpack.c.b16 %v1259, %v1258
        %v1265 = vsel %vm653, %v1240, 0
        %1267 = vmatprep.subr.bf16.mxu0 0
        %1268 = vmatpush1.bf16.msra.mxu0 %v1260
        %1269 = vmatprep.subr.bf16.mxu0 0
        %1270 = vmatpush1.bf16.msra.mxu0 %v1261
        %1271 = vmatprep.subr.bf16.mxu0 0
        %1272 = vmatpush1.bf16.msra.mxu0 0
        %1273 = vmatprep.subr.bf16.mxu0 0
        %1274 = vmatpush1.bf16.msra.mxu0 0
        %1275 = vmatprep.subr.bf16.mxu0 0
        %1276 = vmatpush1.bf16.msra.mxu0 0
        %1277 = vmatprep.subr.bf16.mxu0 0
        %1278 = vmatpush1.bf16.msra.mxu0 0
        %1279 = vmatprep.subr.bf16.mxu0 0
        %1280 = vmatpush1.bf16.msra.mxu0 0
        %1281 = vmatprep.subr.bf16.mxu0 0
        %1282 = vmatpush1.bf16.msra.mxu0 0
        %1283 = vmatprep.subr.bf16.mxu0 0
        %1284 = vmatpush1.bf16.msra.mxu0 0
        %1285 = vmatprep.subr.bf16.mxu0 0
        %1286 = vmatpush1.bf16.msra.mxu0 0
        %1287 = vmatprep.subr.bf16.mxu0 0
        %1288 = vmatpush1.bf16.msra.mxu0 0
        %1289 = vmatprep.subr.bf16.mxu0 0
        %1290 = vmatpush1.bf16.msra.mxu0 0
        %1291 = vmatprep.subr.bf16.mxu0 0
        %1292 = vmatpush1.bf16.msra.mxu0 0
        %1293 = vmatprep.subr.bf16.mxu0 0
        %1294 = vmatpush1.bf16.msra.mxu0 0
        %1295 = vmatprep.subr.bf16.mxu0 0
        %1296 = vmatpush1.bf16.msra.mxu0 0
        %1297 = vmatprep.subr.bf16.mxu0 0
        %1298 = vmatpush1.bf16.msra.mxu0 0
        %1299 = vmatprep.mubr.bf16.mxu0 0
        %1300 = vmatmul.mubr.bf16.gmra.mrb[0].mxu0 %v1265
        %v1301 = vpop.f32.mrb[0].mxu0
        %v1302 = vadd.f32 %v1250, %v1301
        %v1303 = vpop.f32.mrb[0].mxu0
        %v1304 = vpop.f32.mrb[0].mxu0
        %v1305 = vpop.f32.mrb[0].mxu0
        %1306 = vdwg.mxu0
        %v1307 = vadd.f32 %v627, %v1302
        %v1308 = vsel %vm653, %v1307, 0.0
        %1309 = vadd.xlane.f32.xlu0 %v1308
        %v1310 = vpop.xlane.xlu0 %1309
        %v1311 = vrcp.pop 32.0
        %v1312 = vmul.f32 %v1310, %v1311
        %v1313 = vsub.f32 %v1307, %v1312
        %v1314 = vmul.f32 %v1313, %v1313
        %v1315 = vsel %vm653, %v1314, 0.0
        %1316 = vadd.xlane.f32.xlu0 %v1315
        %v1317 = vpop.xlane.xlu0 %1316
        %v1318 = vmul.f32 %v1317, %v1311
        %v1319 = vadd.f32 %v1318, 1e-05
        %v1320 = vrsqrt.pop %v1319
        %v1321 = vmul.f32 %v1313, %v1320
        %v1322 = vld [vmem:[#allocation9] sm:$0x1]
        %v1324 = vlaneseq
        %v1325 = vshrl.u32 %v1324, 7
        %v1326 = vsub.s32 0, %v1325
        %v1327 = vrot.slane %v1322, %v1326
        %v1329 = vmul.f32 %v1321, %v1327
        %v1330 = vld [vmem:[#allocation11] sm:$0x1]
        %v1332 = vlaneseq
        %v1333 = vshrl.u32 %v1332, 7
        %v1334 = vsub.s32 0, %v1333
        %v1335 = vrot.slane %v1330, %v1334
        %v1337 = vadd.f32 %v1329, %v1335
        %v1338 = vpack.c.bf16 %v1337, %v1337
        %v1339 = vld [vmem:[%s10] sm:$0xf]
        %v1340 = vld [vmem:[%s10 + $0x4] sm:$0xf]
        %v1341 = vld [vmem:[%s10 + $0x8] sm:$0xf]
        %v1342 = vld [vmem:[%s10 + $0xc] sm:$0xf]
        %v1343 = vld [vmem:[%s11] sm:$0x1]
        %v1345 = vlaneseq
        %v1346 = vshrl.u32 %v1345, 7
        %v1347 = vsub.s32 0, %v1346
        %v1348 = vrot.slane %v1343, %v1347
        %v1354 = vunpack.c.l.b16 %v1339
        %v1355 = vunpack.c.l.b16 %v1340
        %v1356 = vunpack.c.l.b16 %v1341
        %v1357 = vunpack.c.l.b16 %v1342
        %v1358 = vpack.c.b16 %v1355, %v1354
        %v1359 = vpack.c.b16 %v1357, %v1356
        %v1363 = vsel %vm653, %v1338, 0
        %1365 = vmatprep.subr.bf16.mxu0 0
        %1366 = vmatpush1.bf16.msra.mxu0 %v1358
        %1367 = vmatprep.subr.bf16.mxu0 0
        %1368 = vmatpush1.bf16.msra.mxu0 %v1359
        %1369 = vmatprep.subr.bf16.mxu0 0
        %1370 = vmatpush1.bf16.msra.mxu0 0
        %1371 = vmatprep.subr.bf16.mxu0 0
        %1372 = vmatpush1.bf16.msra.mxu0 0
        %1373 = vmatprep.subr.bf16.mxu0 0
        %1374 = vmatpush1.bf16.msra.mxu0 0
        %1375 = vmatprep.subr.bf16.mxu0 0
        %1376 = vmatpush1.bf16.msra.mxu0 0
        %1377 = vmatprep.subr.bf16.mxu0 0
        %1378 = vmatpush1.bf16.msra.mxu0 0
        %1379 = vmatprep.subr.bf16.mxu0 0
        %1380 = vmatpush1.bf16.msra.mxu0 0
        %1381 = vmatprep.subr.bf16.mxu0 0
        %1382 = vmatpush1.bf16.msra.mxu0 0
        %1383 = vmatprep.subr.bf16.mxu0 0
        %1384 = vmatpush1.bf16.msra.mxu0 0
        %1385 = vmatprep.subr.bf16.mxu0 0
        %1386 = vmatpush1.bf16.msra.mxu0 0
        %1387 = vmatprep.subr.bf16.mxu0 0
        %1388 = vmatpush1.bf16.msra.mxu0 0
        %1389 = vmatprep.subr.bf16.mxu0 0
        %1390 = vmatpush1.bf16.msra.mxu0 0
        %1391 = vmatprep.subr.bf16.mxu0 0
        %1392 = vmatpush1.bf16.msra.mxu0 0
        %1393 = vmatprep.subr.bf16.mxu0 0
        %1394 = vmatpush1.bf16.msra.mxu0 0
        %1395 = vmatprep.subr.bf16.mxu0 0
        %1396 = vmatpush1.bf16.msra.mxu0 0
        %1397 = vmatprep.mubr.bf16.mxu0 0
        %1398 = vmatmul.mubr.bf16.gmra.mrb[0].mxu0 %v1363
        %v1399 = vpop.f32.mrb[0].mxu0
        %v1400 = vadd.f32 %v1348, %v1399
        %v1401 = vpop.f32.mrb[0].mxu0
        %v1402 = vpop.f32.mrb[0].mxu0
        %v1403 = vpop.f32.mrb[0].mxu0
        %1404 = vdwg.mxu0
        %v1405 = vmax.f32 %v1400, 0.0
        %v1406 = vpack.c.bf16 %v1405, %v1405
        %v1407 = vld [vmem:[%s12] sm:$0xf]
        %v1408 = vld [vmem:[%s12 + $0x4] sm:$0xf]
        %v1409 = vld [vmem:[%s12 + $0x8] sm:$0xf]
        %v1410 = vld [vmem:[%s12 + $0xc] sm:$0xf]
        %v1411 = vld [vmem:[%s12 + $0x10] sm:$0xf]
        %v1412 = vld [vmem:[%s12 + $0x14] sm:$0xf]
        %v1413 = vld [vmem:[%s12 + $0x18] sm:$0xf]
        %v1414 = vld [vmem:[%s12 + $0x1c] sm:$0xf]
        %v1415 = vld [vmem:[%s13] sm:$0x1]
        %v1417 = vlaneseq
        %v1418 = vshrl.u32 %v1417, 7
        %v1419 = vsub.s32 0, %v1418
        %v1420 = vrot.slane %v1415, %v1419
        %v1430 = vunpack.c.l.b16 %v1407
        %v1431 = vunpack.c.l.b16 %v1408
        %v1432 = vunpack.c.l.b16 %v1409
        %v1433 = vunpack.c.l.b16 %v1410
        %v1434 = vunpack.c.l.b16 %v1411
        %v1435 = vunpack.c.l.b16 %v1412
        %v1436 = vunpack.c.l.b16 %v1413
        %v1437 = vunpack.c.l.b16 %v1414
        %v1438 = vpack.c.b16 %v1431, %v1430
        %v1439 = vpack.c.b16 %v1433, %v1432
        %v1440 = vpack.c.b16 %v1435, %v1434
        %v1441 = vpack.c.b16 %v1437, %v1436
        %vm1446 = vcmask 523264
        %v1448 = vsel %vm1446, %v1406, 0
        %1450 = vmatprep.subr.bf16.mxu0 0
        %1451 = vmatpush1.bf16.msra.mxu0 %v1438
        %1452 = vmatprep.subr.bf16.mxu0 0
        %1453 = vmatpush1.bf16.msra.mxu0 %v1439
        %1454 = vmatprep.subr.bf16.mxu0 0
        %1455 = vmatpush1.bf16.msra.mxu0 %v1440
        %1456 = vmatprep.subr.bf16.mxu0 0
        %1457 = vmatpush1.bf16.msra.mxu0 %v1441
        %1458 = vmatprep.subr.bf16.mxu0 0
        %1459 = vmatpush1.bf16.msra.mxu0 0
        %1460 = vmatprep.subr.bf16.mxu0 0
        %1461 = vmatpush1.bf16.msra.mxu0 0
        %1462 = vmatprep.subr.bf16.mxu0 0
        %1463 = vmatpush1.bf16.msra.mxu0 0
        %1464 = vmatprep.subr.bf16.mxu0 0
        %1465 = vmatpush1.bf16.msra.mxu0 0
        %1466 = vmatprep.subr.bf16.mxu0 0
        %1467 = vmatpush1.bf16.msra.mxu0 0
        %1468 = vmatprep.subr.bf16.mxu0 0
        %1469 = vmatpush1.bf16.msra.mxu0 0
        %1470 = vmatprep.subr.bf16.mxu0 0
        %1471 = vmatpush1.bf16.msra.mxu0 0
        %1472 = vmatprep.subr.bf16.mxu0 0
        %1473 = vmatpush1.bf16.msra.mxu0 0
        %1474 = vmatprep.subr.bf16.mxu0 0
        %1475 = vmatpush1.bf16.msra.mxu0 0
        %1476 = vmatprep.subr.bf16.mxu0 0
        %1477 = vmatpush1.bf16.msra.mxu0 0
        %1478 = vmatprep.subr.bf16.mxu0 0
        %1479 = vmatpush1.bf16.msra.mxu0 0
        %1480 = vmatprep.subr.bf16.mxu0 0
        %1481 = vmatpush1.bf16.msra.mxu0 0
        %1482 = vmatprep.mubr.bf16.mxu0 0
        %1483 = vmatmul.mubr.bf16.gmra.mrb[0].mxu0 %v1448
        %v1484 = vpop.f32.mrb[0].mxu0
        %v1485 = vadd.f32 %v1420, %v1484
        %v1486 = vpop.f32.mrb[0].mxu0
        %v1487 = vpop.f32.mrb[0].mxu0
        %v1488 = vpop.f32.mrb[0].mxu0
        %1489 = vdwg.mxu0
        %v1490 = vadd.f32 %v1337, %v1485
        %v1491 = vsel %vm653, %v1490, 0.0
        %1492 = vadd.xlane.f32.xlu0 %v1491
        %v1493 = vpop.xlane.xlu0 %1492
        %v1494 = vmul.f32 %v1493, %v1311
        %v1495 = vsub.f32 %v1490, %v1494
        %v1496 = vmul.f32 %v1495, %v1495
        %v1497 = vsel %vm653, %v1496, 0.0
        %1498 = vadd.xlane.f32.xlu0 %v1497
        %v1499 = vpop.xlane.xlu0 %1498
        %v1500 = vmul.f32 %v1499, %v1311
        %v1501 = vadd.f32 %v1500, 1e-05
        %v1502 = vrsqrt.pop %v1501
        %v1503 = vmul.f32 %v1495, %v1502
        %v1504 = vld [vmem:[%s14] sm:$0x1]
        %v1506 = vlaneseq
        %v1507 = vshrl.u32 %v1506, 7
        %v1508 = vsub.s32 0, %v1507
        %v1509 = vrot.slane %v1504, %v1508
        %v1511 = vmul.f32 %v1503, %v1509
        %v1512 = vld [vmem:[%s15] sm:$0x1]
        %v1514 = vlaneseq
        %v1515 = vshrl.u32 %v1514, 7
        %v1516 = vsub.s32 0, %v1515
        %v1517 = vrot.slane %v1512, %v1516
        %v1519 = vadd.f32 %v1511, %v1517
        %1520 = vst.msk [vmem:[%s614] sm:$0xff] %vm653, %v1519
        %s1521 = sand.u32 %s403, 1
        %s1522 = scalar_lea.sflag [#allocation5], %s1521
        %s1523 = sand.u32 %s403, 1
        %s1524 = smul.addr %s1523, 8
        %s1525 = scalar_lea.vmem [#allocation12], %s1524
        // Predicated region
        $region105: #{tpu_custom_call.1} parent=83 // pred_check
          %p1526 = pneg %p413
        $region106: #{tpu_custom_call.1} parent=83 // pred_check_branch
          %1528 = sbr.rel (%p1526) target = $region108
        $region107: #{tpu_custom_call.1} parent=83 // pred_region
          %s1530 = ssub.s32 128, 128
          %1531 = vsyncadd %s1522, %s1530
          %s1532 = sadd.s32 %s38, %s37
          %s1533 = smul.addr %s1532, 128
          %s1534 = scalar_lea.hbm %s16, %s1533
          %s1536 = sshll.u32 %s1525, 4
          %s1537 = int_to_ptr.vmem [resolvable:$true] %s1536
          %1539 = dma.vmem_to_hbm [thread:$0]  %s1537, 128, %s1534, %s1522
        $region108: #{tpu_custom_call.1} parent=83 // pred_fallthru
          _
      $region84: #{tpu_custom_call.1} parent=5 // pred_fallthru
        _
      %p1540 = scmp.le.s32.totalorder 2, %s28
      // Predicated region
      $region109: #{tpu_custom_call.1} parent=5 // pred_check
        %p1541 = pneg %p1540
      $region110: #{tpu_custom_call.1} parent=5 // pred_check_branch
        %1543 = sbr.rel (%p1541) target = $region112
      $region111: #{tpu_custom_call.1} parent=5 // pred_region
        %s1544 = ssub.s32 %s28, 2
        // Predicated region
        $region113: #{tpu_custom_call.1} parent=111 // pred_check
          %p1545 = pneg %p419
        $region114: #{tpu_custom_call.1} parent=111 // pred_check_branch
          %1547 = sbr.rel (%p1545) target = $region116
        $region115: #{tpu_custom_call.1} parent=111 // pred_region
          %s1548 = sand.u32 %s404, 1
          %s1549 = scalar_lea.sflag [#allocation5], %s1548
          %s1550 = sand.u32 %s404, 1
          %s1551 = smul.addr %s1550, 8
          %s1552 = scalar_lea.vmem [#allocation12], %s1551
          %1553 = dma.done %s1549, 128
        $region116: #{tpu_custom_call.1} parent=111 // pred_fallthru
          _
      $region112: #{tpu_custom_call.1} parent=5 // pred_fallthru
        _
    $region6: #{tpu_custom_call.1} parent=1 // loop_footer
      %s32 = sadd.s32 1, %s28
    $region7: #{tpu_custom_call.1} parent=1 // loop_footer_branch
      %27 = sbr.rel target = $region3
    $region8: #{tpu_custom_call.1} parent=1 // loop_exit
      _
    %1554 = vsyncpa [#allocation4], 1
    %s1555 = scalar_lea.sflag [#allocation4], 1
    %1556 = vsyncpa %s1555, 1
    %1557 = vsyncpa [#allocation7], 1
    %1558 = vsyncpa [#allocation10], 1
    %1559 = vsyncpa [#allocation5], 1
    %s1560 = scalar_lea.sflag [#allocation5], 1
    %1561 = vsyncpa %s1560, 1

</llo_original>
